<compile_context>
chip_gen: v5e
topology: v5e:2x2
jax: 0.10.0
libtpu: 0.0.40
codegen_flags: <defaults>
</compile_context>

<pallas_src>
import functools

import jax
import jax.numpy as jnp
from jax import lax
from jax.experimental import pallas as pl
from jax.experimental.pallas import tpu as pltpu


# ---------------------------------------------------------------------------
# Kernel
# ---------------------------------------------------------------------------
def _self_attn_layer_kernel(nheads, eps,
                            feat_ref, gamma_ref, beta_ref,
                            wqkv_ref, bqkv_ref, wo_ref, bo_ref,
                            out_ref, ctx_ref):
    """One grid step = `bt` batch elements, full sequence, full hidden.

    feat_ref : (bt, w, E) f32   activation tile (batch-major)
    gamma/beta: (1, E)    f32   LayerNorm affine
    wqkv_ref : (E, 3E)    bf16  fused in-proj weight (Q columns pre-scaled)
    bqkv_ref : (1, 3E)    f32   fused in-proj bias   (Q part pre-scaled)
    wo_ref   : (E, E)     bf16  out-proj weight
    bo_ref   : (1, E)     f32   out-proj bias
    out_ref  : (bt, w, E) f32   feat + attn(LN(feat))
    ctx_ref  : (bt*w, E)  f32   VMEM scratch: per-head contexts, lane-concat
    """
    bt, w, E = feat_ref.shape
    head_dim = E // nheads
    mxu_dtype = wqkv_ref.dtype          # bf16 operands, f32 accumulation

    x = feat_ref[...]                   # (bt, w, E) f32
    x2 = x.reshape(bt * w, E)

    # ---- norm1: LayerNorm over the hidden dim (f32, VPU) ----
    mean = jnp.mean(x2, axis=-1, keepdims=True)
    var = jnp.mean(jnp.square(x2 - mean), axis=-1, keepdims=True)
    xn = (x2 - mean) * lax.rsqrt(var + eps)
    xn = xn * gamma_ref[...] + beta_ref[...]

    # ---- fused Q/K/V projection: one (bt*w, E) @ (E, 3E) MXU matmul ----
    # (1/sqrt(head_dim) already folded into the Q columns of wqkv / bqkv)
    qkv = jnp.dot(xn.astype(mxu_dtype), wqkv_ref[...],
                  preferred_element_type=jnp.float32) + bqkv_ref[...]
    qkv3 = qkv.reshape(bt, w, 3 * E)

    # ---- per-head attention; ctx written straight into the scratch slab ----
    for h in range(nheads):
        lo = h * head_dim
        qh = qkv3[..., lo:lo + head_dim].astype(mxu_dtype)              # (bt,w,hd)
        kh = qkv3[..., E + lo:E + lo + head_dim].astype(mxu_dtype)      # (bt,w,hd)
        vh = qkv3[..., 2 * E + lo:2 * E + lo + head_dim].astype(mxu_dtype)

        s = jnp.einsum('bqd,bkd->bqk', qh, kh,
                       preferred_element_type=jnp.float32)              # (bt,w,w)
        s = s - jnp.max(s, axis=-1, keepdims=True)
        p = jnp.exp(s)                                                  # f32 exp
        denom = jnp.sum(p, axis=-1, keepdims=True)                      # (bt,w,1)
        ctx = jnp.einsum('bqk,bkd->bqd', p.astype(mxu_dtype), vh,
                         preferred_element_type=jnp.float32)            # (bt,w,hd)
        inv = pl.reciprocal(denom, approx=True)                         # EUP slot
        ctx_ref[:, lo:lo + head_dim] = (ctx * inv).reshape(bt * w, head_dim)

    # ---- fused output projection: one (bt*w, E) @ (E, E) MXU matmul ----
    proj = jnp.dot(ctx_ref[...].astype(mxu_dtype), wo_ref[...],
                   preferred_element_type=jnp.float32) + bo_ref[...]

    # residual uses the *un-normalized* input
    out_ref[...] = x + proj.reshape(bt, w, E)


# ---------------------------------------------------------------------------
# One-time parameter preparation (hoisted out of the per-call path)
# ---------------------------------------------------------------------------
def prepare_params(params, nheads, mxu_dtype=jnp.bfloat16):
    E = params["norm_weight"].shape[0]
    head_dim = E // nheads
    scaling = float(head_dim) ** -0.5

    wqkv = params["in_proj_weight"].astype(jnp.float32).T            # (E, 3E)
    bqkv = params["in_proj_bias"].astype(jnp.float32)                # (3E,)
    col_scale = jnp.concatenate([
        jnp.full((E,), scaling, dtype=jnp.float32),
        jnp.ones((2 * E,), dtype=jnp.float32)])
    wqkv = (wqkv * col_scale[None, :]).astype(mxu_dtype)
    bqkv = (bqkv * col_scale).reshape(1, 3 * E)

    return {
        "wqkv": wqkv,
        "bqkv": bqkv,
        "wo": params["out_proj_weight"].astype(jnp.float32).T.astype(mxu_dtype),
        "bo": params["out_proj_bias"].astype(jnp.float32).reshape(1, E),
        "gamma": params["norm_weight"].astype(jnp.float32).reshape(1, E),
        "beta": params["norm_bias"].astype(jnp.float32).reshape(1, E),
    }


# ---------------------------------------------------------------------------
# Tiling helpers
# ---------------------------------------------------------------------------
def _vmem_limit_bytes():
    """Scoped-VMEM limit above the 16/32 MiB defaults, below physical capacity
    (128 MiB v5e/v6e, 64 MiB v7x)."""
    fallback = 48 * 1024 * 1024
    try:
        cap = int(pltpu.get_tpu_info().vmem_capacity_bytes)
        return min(cap * 3 // 4, 100 * 1024 * 1024)
    except Exception:
        return fallback


def _pick_batch_block(bsz, w, E, vmem_limit, target_m=512):
    """Batch elements per grid step.

    Prefers (a) a grid of >= 2 steps so both v7x TensorCores get work,
    (b) bt*w >= target_m rows for the MXU, (c) staying within ~half the
    scoped-VMEM budget (double buffering + headroom)."""
    divisors = [d for d in range(1, bsz + 1) if bsz % d == 0]
    if bsz >= 2:
        multi = [d for d in divisors if bsz // d >= 2]
        if multi:
            divisors = multi

    def vmem_bytes(bt):
        m = bt * w
        return (2 * 2 * m * E * 4            # in/out tiles, double-buffered, f32
                + m * 3 * E * 4              # qkv intermediate
                + bt * w * w * 4             # one (bt, w, w) score/prob tile
                + m * E * 4                  # ctx scratch slab
                + 2 * (3 * E * E + E * E))   # bf16 weight slabs

    fits = [d for d in divisors if vmem_bytes(d) <= vmem_limit // 2]
    if not fits:
        fits = divisors[:1]
    for d in fits:
        if d * w >= target_m:
            return d
    return fits[-1]


# ---------------------------------------------------------------------------
# Forward wrapper
# ---------------------------------------------------------------------------
def transformer_self_attn_layer(feat_wbe, prepared, nheads):
    """feat_wbe: (w, bsz, hidden) float32 (PyTorch sequence-first layout)."""
    w, bsz, E = feat_wbe.shape
    vmem_limit = _vmem_limit_bytes()
    bt = _pick_batch_block(bsz, w, E, vmem_limit)
    grid = (bsz // bt,)

    # Batch-major so every BlockSpec's minor two dims are the full (w, E)
    # extent (legal and lane/sublane dense for any bt).
    feat = jnp.transpose(feat_wbe, (1, 0, 2))            # (bsz, w, E)

    kernel = functools.partial(_self_attn_layer_kernel, nheads, 1e-5)

    def call(single_buffer_weights):
        def rep(shape):
            idx = lambda b: (0,) * len(shape)
            if single_buffer_weights:
                # constant index_map -> fetched once; 1 buffer saves VMEM
                return pl.BlockSpec(shape, idx, pipeline_mode=pl.Buffered(1))
            return pl.BlockSpec(shape, idx)

        return pl.pallas_call(
            kernel,
            out_shape=jax.ShapeDtypeStruct((bsz, w, E), jnp.float32),
            grid=grid,
            in_specs=[
                pl.BlockSpec((bt, w, E), lambda b: (b, 0, 0)),   # feat tile
                rep((1, E)), rep((1, E)),                        # gamma, beta
                rep((E, 3 * E)), rep((1, 3 * E)),                # W_qkv, b_qkv
                rep((E, E)), rep((1, E)),                        # W_o, b_o
            ],
            out_specs=pl.BlockSpec((bt, w, E), lambda b: (b, 0, 0)),
            scratch_shapes=[pltpu.VMEM((bt * w, E), jnp.float32)],
            compiler_params=pltpu.CompilerParams(
                dimension_semantics=("parallel",),               # batch independent
                vmem_limit_bytes=vmem_limit),
        )(feat, prepared["gamma"], prepared["beta"],
          prepared["wqkv"], prepared["bqkv"],
          prepared["wo"], prepared["bo"])

    try:
        out = call(True)
    except Exception:
        # Buffered(1) on the weight specs is only a VMEM optimization; fall
        # back to default double buffering if this jax build rejects it.
        out = call(False)

    return jnp.transpose(out, (1, 0, 2))                  # back to (w, bsz, E)


# ---------------------------------------------------------------------------
# Pure-JAX reference mirroring the PyTorch forward exactly (f32)
# ---------------------------------------------------------------------------
def reference(feat, params, nheads):
    w, bsz, E = feat.shape
    hd = E // nheads
    x = feat
    mean = x.mean(-1, keepdims=True)
    var = ((x - mean) ** 2).mean(-1, keepdims=True)
    xn = (x - mean) / jnp.sqrt(var + 1e-5)
    xn = xn * params["norm_weight"] + params["norm_bias"]
    qkv = xn @ params["in_proj_weight"].T + params["in_proj_bias"]
    q, k, v = jnp.split(qkv, 3, axis=-1)
    q = q * float(hd) ** -0.5
    q = q.reshape(w, bsz, nheads, hd)
    k = k.reshape(w, bsz, nheads, hd)
    v = v.reshape(w, bsz, nheads, hd)
    attn = jnp.einsum('wnec,vnec->newv', q, k)
    attn = jax.nn.softmax(attn, axis=-1)
    vout = jnp.einsum('newv,vnec->wnec', attn, v).reshape(w, bsz, E)
    vout = vout @ params["out_proj_weight"].T + params["out_proj_bias"]
    return feat + vout


if __name__ == "__main__":
    W, BSZ, HIDDEN, NHEADS = 16, 2, 32, 4   # seq=16, batch=2, hidden=32, 4 heads

    key = jax.random.PRNGKey(0)
    kf, k1, k2, k3, k4, k5, k6 = jax.random.split(key, 7)

    feat = jax.random.normal(kf, (W, BSZ, HIDDEN), dtype=jnp.float32)

    params = {
        "in_proj_weight": 0.1 * jax.random.normal(k1, (3 * HIDDEN, HIDDEN), jnp.float32),
        "in_proj_bias":   0.1 * jax.random.normal(k2, (3 * HIDDEN,), jnp.float32),
        "out_proj_weight": 0.1 * jax.random.normal(k3, (HIDDEN, HIDDEN), jnp.float32),
        "out_proj_bias":   0.1 * jax.random.normal(k4, (HIDDEN,), jnp.float32),
        "norm_weight": 1.0 + 0.1 * jax.random.normal(k5, (HIDDEN,), jnp.float32),
        "norm_bias":   0.1 * jax.random.normal(k6, (HIDDEN,), jnp.float32),
    }

    prepared = prepare_params(params, NHEADS)           # one-time weight prep
    out = transformer_self_attn_layer(feat, prepared, NHEADS)
    out = jax.block_until_ready(out)

    ref = reference(feat, params, NHEADS)
    assert out.shape == (W, BSZ, HIDDEN)
    # bf16 MXU operands (f32 accumulation) + EUP approximate reciprocal in the
    # softmax normalization -> compare at a bf16-level tolerance.
    max_err = float(jnp.max(jnp.abs(out - ref)))
    assert max_err < 5e-2, f"mismatch vs reference: max abs err {max_err}"

    print("KERNEL_OK")
</pallas_src>

<mosaic_0001>
module attributes {stable_mosaic.version = 11 : i64} {
  func.func @_self_attn_layer_kernel(%arg0: i32, %arg1: memref<1x16x32xf32, #tpu.memory_space<vmem>>, %arg2: memref<1x32xf32, #tpu.memory_space<vmem>>, %arg3: memref<1x32xf32, #tpu.memory_space<vmem>>, %arg4: memref<32x96xbf16, #tpu.memory_space<vmem>>, %arg5: memref<1x96xf32, #tpu.memory_space<vmem>>, %arg6: memref<32x32xbf16, #tpu.memory_space<vmem>>, %arg7: memref<1x32xf32, #tpu.memory_space<vmem>>, %arg8: memref<1x16x32xf32, #tpu.memory_space<vmem>>, %arg9: memref<16x32xf32, #tpu.memory_space<vmem>>) attributes {dimension_semantics = [#tpu.dimension_semantics<parallel>], iteration_bounds = array<i64: 2>, scalar_prefetch = 0 : i64, scratch_operands = 1 : i64, tpu.core_type = #tpu.core_type<tc>, window_params = [{transform_indices = @transform_0, window_bounds = array<i64: 1, 16, 32>}, {pipeline_mode = #tpu.pipeline_mode<synchronous>, transform_indices = @transform_1, window_bounds = array<i64: 1, 32>}, {pipeline_mode = #tpu.pipeline_mode<synchronous>, transform_indices = @transform_2, window_bounds = array<i64: 1, 32>}, {pipeline_mode = #tpu.pipeline_mode<synchronous>, transform_indices = @transform_3, window_bounds = array<i64: 32, 96>}, {pipeline_mode = #tpu.pipeline_mode<synchronous>, transform_indices = @transform_4, window_bounds = array<i64: 1, 96>}, {pipeline_mode = #tpu.pipeline_mode<synchronous>, transform_indices = @transform_5, window_bounds = array<i64: 32, 32>}, {pipeline_mode = #tpu.pipeline_mode<synchronous>, transform_indices = @transform_6, window_bounds = array<i64: 1, 32>}, {transform_indices = @transform_7, window_bounds = array<i64: 1, 16, 32>}]} {
    %c0 = arith.constant 0 : index
    %c0_0 = arith.constant 0 : index
    %c0_1 = arith.constant 0 : index
    %0 = vector.load %arg1[%c0, %c0_0, %c0_1] : memref<1x16x32xf32, #tpu.memory_space<vmem>>, vector<1x16x32xf32>
    %1 = vector.shape_cast %0 : vector<1x16x32xf32> to vector<16x32xf32>
    %cst = arith.constant dense<0.000000e+00> : vector<16xf32>
    %2 = vector.multi_reduction <add>, %1, %cst [1] : vector<16x32xf32> to vector<16xf32>
    %3 = vector.shape_cast %2 : vector<16xf32> to vector<16x1xf32>
    %cst_2 = arith.constant 3.200000e+01 : f32
    %4 = vector.broadcast %cst_2 : f32 to vector<16x1xf32>
    %5 = arith.divf %3, %4 : vector<16x1xf32>
    %6 = vector.broadcast %5 : vector<16x1xf32> to vector<16x32xf32>
    %7 = arith.subf %1, %6 : vector<16x32xf32>
    %8 = arith.mulf %7, %7 : vector<16x32xf32>
    %cst_3 = arith.constant dense<0.000000e+00> : vector<16xf32>
    %9 = vector.multi_reduction <add>, %8, %cst_3 [1] : vector<16x32xf32> to vector<16xf32>
    %10 = vector.shape_cast %9 : vector<16xf32> to vector<16x1xf32>
    %cst_4 = arith.constant 3.200000e+01 : f32
    %11 = vector.broadcast %cst_4 : f32 to vector<16x1xf32>
    %12 = arith.divf %10, %11 : vector<16x1xf32>
    %13 = vector.broadcast %5 : vector<16x1xf32> to vector<16x32xf32>
    %14 = arith.subf %1, %13 : vector<16x32xf32>
    %cst_5 = arith.constant 9.99999974E-6 : f32
    %15 = vector.broadcast %cst_5 : f32 to vector<16x1xf32>
    %16 = arith.addf %12, %15 : vector<16x1xf32>
    %17 = math.rsqrt %16 : vector<16x1xf32>
    %18 = vector.broadcast %17 : vector<16x1xf32> to vector<16x32xf32>
    %19 = arith.mulf %14, %18 : vector<16x32xf32>
    %c0_6 = arith.constant 0 : index
    %c0_7 = arith.constant 0 : index
    %20 = vector.load %arg2[%c0_6, %c0_7] : memref<1x32xf32, #tpu.memory_space<vmem>>, vector<1x32xf32>
    %21 = vector.broadcast %20 : vector<1x32xf32> to vector<16x32xf32>
    %22 = arith.mulf %19, %21 : vector<16x32xf32>
    %c0_8 = arith.constant 0 : index
    %c0_9 = arith.constant 0 : index
    %23 = vector.load %arg3[%c0_8, %c0_9] : memref<1x32xf32, #tpu.memory_space<vmem>>, vector<1x32xf32>
    %24 = vector.broadcast %23 : vector<1x32xf32> to vector<16x32xf32>
    %25 = arith.addf %22, %24 : vector<16x32xf32>
    %26 = arith.truncf %25 : vector<16x32xf32> to vector<16x32xbf16>
    %c0_10 = arith.constant 0 : index
    %c0_11 = arith.constant 0 : index
    %27 = vector.load %arg4[%c0_10, %c0_11] : memref<32x96xbf16, #tpu.memory_space<vmem>>, vector<32x96xbf16>
    %cst_12 = arith.constant dense<0.000000e+00> : vector<16x96xf32>
    %28 = tpu.matmul %26, %27, %cst_12 {dimension_numbers = #tpu.dot_dimension_numbers<[1], [0], [0], [1], [0, 0, 1, 1], [], []>} : vector<16x32xbf16>, vector<32x96xbf16>, vector<16x96xf32> -> vector<16x96xf32>
    %c0_13 = arith.constant 0 : index
    %c0_14 = arith.constant 0 : index
    %29 = vector.load %arg5[%c0_13, %c0_14] : memref<1x96xf32, #tpu.memory_space<vmem>>, vector<1x96xf32>
    %30 = vector.broadcast %29 : vector<1x96xf32> to vector<16x96xf32>
    %31 = arith.addf %28, %30 : vector<16x96xf32>
    %32 = vector.shape_cast %31 : vector<16x96xf32> to vector<1x16x96xf32>
    %33 = vector.extract_strided_slice %32 {offsets = [0, 0, 0], sizes = [1, 16, 8], strides = [1, 1, 1]} : vector<1x16x96xf32> to vector<1x16x8xf32>
    %34 = arith.truncf %33 : vector<1x16x8xf32> to vector<1x16x8xbf16>
    %35 = vector.extract_strided_slice %32 {offsets = [0, 0, 32], sizes = [1, 16, 8], strides = [1, 1, 1]} : vector<1x16x96xf32> to vector<1x16x8xf32>
    %36 = arith.truncf %35 : vector<1x16x8xf32> to vector<1x16x8xbf16>
    %37 = vector.extract_strided_slice %32 {offsets = [0, 0, 64], sizes = [1, 16, 8], strides = [1, 1, 1]} : vector<1x16x96xf32> to vector<1x16x8xf32>
    %38 = arith.truncf %37 : vector<1x16x8xf32> to vector<1x16x8xbf16>
    "tpu.trace_start"() <{level = 10 : i32, message = "bqd,bkd->bqk"}> : () -> ()
    %cst_15 = arith.constant dense<0.000000e+00> : vector<1x16x16xf32>
    %39 = tpu.matmul %34, %36, %cst_15 {dimension_numbers = #tpu.dot_dimension_numbers<[2], [2], [1], [1], [0, 0, 0, 1, 1, 1], [0], [0]>} : vector<1x16x8xbf16>, vector<1x16x8xbf16>, vector<1x16x16xf32> -> vector<1x16x16xf32>
    "tpu.trace_stop"() : () -> ()
    %cst_16 = arith.constant dense<0xFF800000> : vector<1x16xf32>
    %40 = vector.multi_reduction <maximumf>, %39, %cst_16 [2] : vector<1x16x16xf32> to vector<1x16xf32>
    %41 = vector.shape_cast %40 : vector<1x16xf32> to vector<1x16x1xf32>
    %42 = vector.broadcast %41 : vector<1x16x1xf32> to vector<1x16x16xf32>
    %43 = arith.subf %39, %42 : vector<1x16x16xf32>
    %44 = math.exp %43 : vector<1x16x16xf32>
    %cst_17 = arith.constant dense<0.000000e+00> : vector<1x16xf32>
    %45 = vector.multi_reduction <add>, %44, %cst_17 [2] : vector<1x16x16xf32> to vector<1x16xf32>
    %46 = vector.shape_cast %45 : vector<1x16xf32> to vector<1x16x1xf32>
    %47 = arith.truncf %44 : vector<1x16x16xf32> to vector<1x16x16xbf16>
    "tpu.trace_start"() <{level = 10 : i32, message = "bqk,bkd->bqd"}> : () -> ()
    %cst_18 = arith.constant dense<0.000000e+00> : vector<1x16x8xf32>
    %48 = tpu.matmul %47, %38, %cst_18 {dimension_numbers = #tpu.dot_dimension_numbers<[2], [1], [1], [2], [0, 0, 0, 1, 1, 2], [0], [0]>} : vector<1x16x16xbf16>, vector<1x16x8xbf16>, vector<1x16x8xf32> -> vector<1x16x8xf32>
    "tpu.trace_stop"() : () -> ()
    %49 = tpu.reciprocal %46 {approx = true} : vector<1x16x1xf32> -> vector<1x16x1xf32>
    %50 = vector.broadcast %49 : vector<1x16x1xf32> to vector<1x16x8xf32>
    %51 = arith.mulf %48, %50 : vector<1x16x8xf32>
    %52 = vector.shape_cast %51 : vector<1x16x8xf32> to vector<16x8xf32>
    %c0_19 = arith.constant 0 : index
    %c0_20 = arith.constant 0 : index
    %53 = vector.load %arg9[%c0_19, %c0_20] : memref<16x32xf32, #tpu.memory_space<vmem>>, vector<16x8xf32>
    tpu.vector_store %arg9[%c0_19, %c0_20], %52 {strides = array<i32>} : memref<16x32xf32, #tpu.memory_space<vmem>>, vector<16x8xf32>,
    %54 = vector.extract_strided_slice %32 {offsets = [0, 0, 8], sizes = [1, 16, 8], strides = [1, 1, 1]} : vector<1x16x96xf32> to vector<1x16x8xf32>
    %55 = arith.truncf %54 : vector<1x16x8xf32> to vector<1x16x8xbf16>
    %56 = vector.extract_strided_slice %32 {offsets = [0, 0, 40], sizes = [1, 16, 8], strides = [1, 1, 1]} : vector<1x16x96xf32> to vector<1x16x8xf32>
    %57 = arith.truncf %56 : vector<1x16x8xf32> to vector<1x16x8xbf16>
    %58 = vector.extract_strided_slice %32 {offsets = [0, 0, 72], sizes = [1, 16, 8], strides = [1, 1, 1]} : vector<1x16x96xf32> to vector<1x16x8xf32>
    %59 = arith.truncf %58 : vector<1x16x8xf32> to vector<1x16x8xbf16>
    "tpu.trace_start"() <{level = 10 : i32, message = "bqd,bkd->bqk"}> : () -> ()
    %cst_21 = arith.constant dense<0.000000e+00> : vector<1x16x16xf32>
    %60 = tpu.matmul %55, %57, %cst_21 {dimension_numbers = #tpu.dot_dimension_numbers<[2], [2], [1], [1], [0, 0, 0, 1, 1, 1], [0], [0]>} : vector<1x16x8xbf16>, vector<1x16x8xbf16>, vector<1x16x16xf32> -> vector<1x16x16xf32>
    "tpu.trace_stop"() : () -> ()
    %cst_22 = arith.constant dense<0xFF800000> : vector<1x16xf32>
    %61 = vector.multi_reduction <maximumf>, %60, %cst_22 [2] : vector<1x16x16xf32> to vector<1x16xf32>
    %62 = vector.shape_cast %61 : vector<1x16xf32> to vector<1x16x1xf32>
    %63 = vector.broadcast %62 : vector<1x16x1xf32> to vector<1x16x16xf32>
    %64 = arith.subf %60, %63 : vector<1x16x16xf32>
    %65 = math.exp %64 : vector<1x16x16xf32>
    %cst_23 = arith.constant dense<0.000000e+00> : vector<1x16xf32>
    %66 = vector.multi_reduction <add>, %65, %cst_23 [2] : vector<1x16x16xf32> to vector<1x16xf32>
    %67 = vector.shape_cast %66 : vector<1x16xf32> to vector<1x16x1xf32>
    %68 = arith.truncf %65 : vector<1x16x16xf32> to vector<1x16x16xbf16>
    "tpu.trace_start"() <{level = 10 : i32, message = "bqk,bkd->bqd"}> : () -> ()
    %cst_24 = arith.constant dense<0.000000e+00> : vector<1x16x8xf32>
    %69 = tpu.matmul %68, %59, %cst_24 {dimension_numbers = #tpu.dot_dimension_numbers<[2], [1], [1], [2], [0, 0, 0, 1, 1, 2], [0], [0]>} : vector<1x16x16xbf16>, vector<1x16x8xbf16>, vector<1x16x8xf32> -> vector<1x16x8xf32>
    "tpu.trace_stop"() : () -> ()
    %70 = tpu.reciprocal %67 {approx = true} : vector<1x16x1xf32> -> vector<1x16x1xf32>
    %71 = vector.broadcast %70 : vector<1x16x1xf32> to vector<1x16x8xf32>
    %72 = arith.mulf %69, %71 : vector<1x16x8xf32>
    %73 = vector.shape_cast %72 : vector<1x16x8xf32> to vector<16x8xf32>
    %c0_25 = arith.constant 0 : index
    %c8 = arith.constant 8 : index
    %74 = vector.load %arg9[%c0_25, %c8] : memref<16x32xf32, #tpu.memory_space<vmem>>, vector<16x8xf32>
    tpu.vector_store %arg9[%c0_25, %c8], %73 {strides = array<i32>} : memref<16x32xf32, #tpu.memory_space<vmem>>, vector<16x8xf32>,
    %75 = vector.extract_strided_slice %32 {offsets = [0, 0, 16], sizes = [1, 16, 8], strides = [1, 1, 1]} : vector<1x16x96xf32> to vector<1x16x8xf32>
    %76 = arith.truncf %75 : vector<1x16x8xf32> to vector<1x16x8xbf16>
    %77 = vector.extract_strided_slice %32 {offsets = [0, 0, 48], sizes = [1, 16, 8], strides = [1, 1, 1]} : vector<1x16x96xf32> to vector<1x16x8xf32>
    %78 = arith.truncf %77 : vector<1x16x8xf32> to vector<1x16x8xbf16>
    %79 = vector.extract_strided_slice %32 {offsets = [0, 0, 80], sizes = [1, 16, 8], strides = [1, 1, 1]} : vector<1x16x96xf32> to vector<1x16x8xf32>
    %80 = arith.truncf %79 : vector<1x16x8xf32> to vector<1x16x8xbf16>
    "tpu.trace_start"() <{level = 10 : i32, message = "bqd,bkd->bqk"}> : () -> ()
    %cst_26 = arith.constant dense<0.000000e+00> : vector<1x16x16xf32>
    %81 = tpu.matmul %76, %78, %cst_26 {dimension_numbers = #tpu.dot_dimension_numbers<[2], [2], [1], [1], [0, 0, 0, 1, 1, 1], [0], [0]>} : vector<1x16x8xbf16>, vector<1x16x8xbf16>, vector<1x16x16xf32> -> vector<1x16x16xf32>
    "tpu.trace_stop"() : () -> ()
    %cst_27 = arith.constant dense<0xFF800000> : vector<1x16xf32>
    %82 = vector.multi_reduction <maximumf>, %81, %cst_27 [2] : vector<1x16x16xf32> to vector<1x16xf32>
    %83 = vector.shape_cast %82 : vector<1x16xf32> to vector<1x16x1xf32>
    %84 = vector.broadcast %83 : vector<1x16x1xf32> to vector<1x16x16xf32>
    %85 = arith.subf %81, %84 : vector<1x16x16xf32>
    %86 = math.exp %85 : vector<1x16x16xf32>
    %cst_28 = arith.constant dense<0.000000e+00> : vector<1x16xf32>
    %87 = vector.multi_reduction <add>, %86, %cst_28 [2] : vector<1x16x16xf32> to vector<1x16xf32>
    %88 = vector.shape_cast %87 : vector<1x16xf32> to vector<1x16x1xf32>
    %89 = arith.truncf %86 : vector<1x16x16xf32> to vector<1x16x16xbf16>
    "tpu.trace_start"() <{level = 10 : i32, message = "bqk,bkd->bqd"}> : () -> ()
    %cst_29 = arith.constant dense<0.000000e+00> : vector<1x16x8xf32>
    %90 = tpu.matmul %89, %80, %cst_29 {dimension_numbers = #tpu.dot_dimension_numbers<[2], [1], [1], [2], [0, 0, 0, 1, 1, 2], [0], [0]>} : vector<1x16x16xbf16>, vector<1x16x8xbf16>, vector<1x16x8xf32> -> vector<1x16x8xf32>
    "tpu.trace_stop"() : () -> ()
    %91 = tpu.reciprocal %88 {approx = true} : vector<1x16x1xf32> -> vector<1x16x1xf32>
    %92 = vector.broadcast %91 : vector<1x16x1xf32> to vector<1x16x8xf32>
    %93 = arith.mulf %90, %92 : vector<1x16x8xf32>
    %94 = vector.shape_cast %93 : vector<1x16x8xf32> to vector<16x8xf32>
    %c0_30 = arith.constant 0 : index
    %c16 = arith.constant 16 : index
    %95 = vector.load %arg9[%c0_30, %c16] : memref<16x32xf32, #tpu.memory_space<vmem>>, vector<16x8xf32>
    tpu.vector_store %arg9[%c0_30, %c16], %94 {strides = array<i32>} : memref<16x32xf32, #tpu.memory_space<vmem>>, vector<16x8xf32>,
    %96 = vector.extract_strided_slice %32 {offsets = [0, 0, 24], sizes = [1, 16, 8], strides = [1, 1, 1]} : vector<1x16x96xf32> to vector<1x16x8xf32>
    %97 = arith.truncf %96 : vector<1x16x8xf32> to vector<1x16x8xbf16>
    %98 = vector.extract_strided_slice %32 {offsets = [0, 0, 56], sizes = [1, 16, 8], strides = [1, 1, 1]} : vector<1x16x96xf32> to vector<1x16x8xf32>
    %99 = arith.truncf %98 : vector<1x16x8xf32> to vector<1x16x8xbf16>
    %100 = vector.extract_strided_slice %32 {offsets = [0, 0, 88], sizes = [1, 16, 8], strides = [1, 1, 1]} : vector<1x16x96xf32> to vector<1x16x8xf32>
    %101 = arith.truncf %100 : vector<1x16x8xf32> to vector<1x16x8xbf16>
    "tpu.trace_start"() <{level = 10 : i32, message = "bqd,bkd->bqk"}> : () -> ()
    %cst_31 = arith.constant dense<0.000000e+00> : vector<1x16x16xf32>
    %102 = tpu.matmul %97, %99, %cst_31 {dimension_numbers = #tpu.dot_dimension_numbers<[2], [2], [1], [1], [0, 0, 0, 1, 1, 1], [0], [0]>} : vector<1x16x8xbf16>, vector<1x16x8xbf16>, vector<1x16x16xf32> -> vector<1x16x16xf32>
    "tpu.trace_stop"() : () -> ()
    %cst_32 = arith.constant dense<0xFF800000> : vector<1x16xf32>
    %103 = vector.multi_reduction <maximumf>, %102, %cst_32 [2] : vector<1x16x16xf32> to vector<1x16xf32>
    %104 = vector.shape_cast %103 : vector<1x16xf32> to vector<1x16x1xf32>
    %105 = vector.broadcast %104 : vector<1x16x1xf32> to vector<1x16x16xf32>
    %106 = arith.subf %102, %105 : vector<1x16x16xf32>
    %107 = math.exp %106 : vector<1x16x16xf32>
    %cst_33 = arith.constant dense<0.000000e+00> : vector<1x16xf32>
    %108 = vector.multi_reduction <add>, %107, %cst_33 [2] : vector<1x16x16xf32> to vector<1x16xf32>
    %109 = vector.shape_cast %108 : vector<1x16xf32> to vector<1x16x1xf32>
    %110 = arith.truncf %107 : vector<1x16x16xf32> to vector<1x16x16xbf16>
    "tpu.trace_start"() <{level = 10 : i32, message = "bqk,bkd->bqd"}> : () -> ()
    %cst_34 = arith.constant dense<0.000000e+00> : vector<1x16x8xf32>
    %111 = tpu.matmul %110, %101, %cst_34 {dimension_numbers = #tpu.dot_dimension_numbers<[2], [1], [1], [2], [0, 0, 0, 1, 1, 2], [0], [0]>} : vector<1x16x16xbf16>, vector<1x16x8xbf16>, vector<1x16x8xf32> -> vector<1x16x8xf32>
    "tpu.trace_stop"() : () -> ()
    %112 = tpu.reciprocal %109 {approx = true} : vector<1x16x1xf32> -> vector<1x16x1xf32>
    %113 = vector.broadcast %112 : vector<1x16x1xf32> to vector<1x16x8xf32>
    %114 = arith.mulf %111, %113 : vector<1x16x8xf32>
    %115 = vector.shape_cast %114 : vector<1x16x8xf32> to vector<16x8xf32>
    %c0_35 = arith.constant 0 : index
    %c24 = arith.constant 24 : index
    %116 = vector.load %arg9[%c0_35, %c24] : memref<16x32xf32, #tpu.memory_space<vmem>>, vector<16x8xf32>
    tpu.vector_store %arg9[%c0_35, %c24], %115 {strides = array<i32>} : memref<16x32xf32, #tpu.memory_space<vmem>>, vector<16x8xf32>,
    %c0_36 = arith.constant 0 : index
    %c0_37 = arith.constant 0 : index
    %117 = vector.load %arg9[%c0_36, %c0_37] : memref<16x32xf32, #tpu.memory_space<vmem>>, vector<16x32xf32>
    %118 = arith.truncf %117 : vector<16x32xf32> to vector<16x32xbf16>
    %c0_38 = arith.constant 0 : index
    %c0_39 = arith.constant 0 : index
    %119 = vector.load %arg6[%c0_38, %c0_39] : memref<32x32xbf16, #tpu.memory_space<vmem>>, vector<32x32xbf16>
    %cst_40 = arith.constant dense<0.000000e+00> : vector<16x32xf32>
    %120 = tpu.matmul %118, %119, %cst_40 {dimension_numbers = #tpu.dot_dimension_numbers<[1], [0], [0], [1], [0, 0, 1, 1], [], []>} : vector<16x32xbf16>, vector<32x32xbf16>, vector<16x32xf32> -> vector<16x32xf32>
    %c0_41 = arith.constant 0 : index
    %c0_42 = arith.constant 0 : index
    %121 = vector.load %arg7[%c0_41, %c0_42] : memref<1x32xf32, #tpu.memory_space<vmem>>, vector<1x32xf32>
    %122 = vector.broadcast %121 : vector<1x32xf32> to vector<16x32xf32>
    %123 = arith.addf %120, %122 : vector<16x32xf32>
    %124 = vector.shape_cast %123 : vector<16x32xf32> to vector<1x16x32xf32>
    %125 = arith.addf %0, %124 : vector<1x16x32xf32>
    %c0_43 = arith.constant 0 : index
    %c0_44 = arith.constant 0 : index
    %c0_45 = arith.constant 0 : index
    %126 = vector.load %arg8[%c0_43, %c0_44, %c0_45] : memref<1x16x32xf32, #tpu.memory_space<vmem>>, vector<1x16x32xf32>
    tpu.vector_store %arg8[%c0_43, %c0_44, %c0_45], %125 {strides = array<i32>} : memref<1x16x32xf32, #tpu.memory_space<vmem>>, vector<1x16x32xf32>,
    return
  }
  func.func @transform_0(%arg0: i32) -> (i32, i32, i32) {
    %c0_i32 = arith.constant 0 : i32
    %c0_i32_0 = arith.constant 0 : i32
    %c0_i32_1 = arith.constant 0 : i32
    return %arg0, %c0_i32, %c0_i32_0 : i32, i32, i32
  }
  func.func @transform_1(%arg0: i32) -> (i32, i32) {
    %c0_i32 = arith.constant 0 : i32
    %c0_i32_0 = arith.constant 0 : i32
    %c0_i32_1 = arith.constant 0 : i32
    return %c0_i32, %c0_i32_0 : i32, i32
  }
  func.func @transform_2(%arg0: i32) -> (i32, i32) {
    %c0_i32 = arith.constant 0 : i32
    %c0_i32_0 = arith.constant 0 : i32
    %c0_i32_1 = arith.constant 0 : i32
    return %c0_i32, %c0_i32_0 : i32, i32
  }
  func.func @transform_3(%arg0: i32) -> (i32, i32) {
    %c0_i32 = arith.constant 0 : i32
    %c0_i32_0 = arith.constant 0 : i32
    %c0_i32_1 = arith.constant 0 : i32
    return %c0_i32, %c0_i32_0 : i32, i32
  }
  func.func @transform_4(%arg0: i32) -> (i32, i32) {
    %c0_i32 = arith.constant 0 : i32
    %c0_i32_0 = arith.constant 0 : i32
    %c0_i32_1 = arith.constant 0 : i32
    return %c0_i32, %c0_i32_0 : i32, i32
  }
  func.func @transform_5(%arg0: i32) -> (i32, i32) {
    %c0_i32 = arith.constant 0 : i32
    %c0_i32_0 = arith.constant 0 : i32
    %c0_i32_1 = arith.constant 0 : i32
    return %c0_i32, %c0_i32_0 : i32, i32
  }
  func.func @transform_6(%arg0: i32) -> (i32, i32) {
    %c0_i32 = arith.constant 0 : i32
    %c0_i32_0 = arith.constant 0 : i32
    %c0_i32_1 = arith.constant 0 : i32
    return %c0_i32, %c0_i32_0 : i32, i32
  }
  func.func @transform_7(%arg0: i32) -> (i32, i32, i32) {
    %c0_i32 = arith.constant 0 : i32
    %c0_i32_0 = arith.constant 0 : i32
    %c0_i32_1 = arith.constant 0 : i32
    return %arg0, %c0_i32, %c0_i32_0 : i32, i32, i32
  }
}

module attributes {stable_mosaic.version = 11 : i64} {
  func.func @_self_attn_layer_kernel(%arg0: i32, %arg1: memref<1x16x32xf32, #tpu.memory_space<vmem>>, %arg2: memref<1x32xf32, #tpu.memory_space<vmem>>, %arg3: memref<1x32xf32, #tpu.memory_space<vmem>>, %arg4: memref<32x96xbf16, #tpu.memory_space<vmem>>, %arg5: memref<1x96xf32, #tpu.memory_space<vmem>>, %arg6: memref<32x32xbf16, #tpu.memory_space<vmem>>, %arg7: memref<1x32xf32, #tpu.memory_space<vmem>>, %arg8: memref<1x16x32xf32, #tpu.memory_space<vmem>>, %arg9: memref<16x32xf32, #tpu.memory_space<vmem>>) attributes {dimension_semantics = [#tpu.dimension_semantics<parallel>], iteration_bounds = array<i64: 2>, scalar_prefetch = 0 : i64, scratch_operands = 1 : i64, tpu.core_type = #tpu.core_type<tc>, window_params = [{transform_indices = @transform_0, window_bounds = array<i64: 1, 16, 32>}, {pipeline_mode = #tpu.pipeline_mode<synchronous>, transform_indices = @transform_1, window_bounds = array<i64: 1, 32>}, {pipeline_mode = #tpu.pipeline_mode<synchronous>, transform_indices = @transform_2, window_bounds = array<i64: 1, 32>}, {pipeline_mode = #tpu.pipeline_mode<synchronous>, transform_indices = @transform_3, window_bounds = array<i64: 32, 96>}, {pipeline_mode = #tpu.pipeline_mode<synchronous>, transform_indices = @transform_4, window_bounds = array<i64: 1, 96>}, {pipeline_mode = #tpu.pipeline_mode<synchronous>, transform_indices = @transform_5, window_bounds = array<i64: 32, 32>}, {pipeline_mode = #tpu.pipeline_mode<synchronous>, transform_indices = @transform_6, window_bounds = array<i64: 1, 32>}, {transform_indices = @transform_7, window_bounds = array<i64: 1, 16, 32>}]} {
    %c0 = arith.constant 0 : index
    %c0_0 = arith.constant 0 : index
    %c0_1 = arith.constant 0 : index
    %0 = vector.load %arg1[%c0, %c0_0, %c0_1] : memref<1x16x32xf32, #tpu.memory_space<vmem>>, vector<1x16x32xf32>
    %1 = vector.shape_cast %0 : vector<1x16x32xf32> to vector<16x32xf32>
    %cst = arith.constant dense<0.000000e+00> : vector<16xf32>
    %2 = vector.multi_reduction <add>, %1, %cst [1] : vector<16x32xf32> to vector<16xf32>
    %3 = vector.shape_cast %2 : vector<16xf32> to vector<16x1xf32>
    %cst_2 = arith.constant 3.200000e+01 : f32
    %4 = vector.broadcast %cst_2 : f32 to vector<16x1xf32>
    %5 = arith.divf %3, %4 : vector<16x1xf32>
    %6 = vector.broadcast %5 : vector<16x1xf32> to vector<16x32xf32>
    %7 = arith.subf %1, %6 : vector<16x32xf32>
    %8 = arith.mulf %7, %7 : vector<16x32xf32>
    %cst_3 = arith.constant dense<0.000000e+00> : vector<16xf32>
    %9 = vector.multi_reduction <add>, %8, %cst_3 [1] : vector<16x32xf32> to vector<16xf32>
    %10 = vector.shape_cast %9 : vector<16xf32> to vector<16x1xf32>
    %cst_4 = arith.constant 3.200000e+01 : f32
    %11 = vector.broadcast %cst_4 : f32 to vector<16x1xf32>
    %12 = arith.divf %10, %11 : vector<16x1xf32>
    %13 = vector.broadcast %5 : vector<16x1xf32> to vector<16x32xf32>
    %14 = arith.subf %1, %13 : vector<16x32xf32>
    %cst_5 = arith.constant 9.99999974E-6 : f32
    %15 = vector.broadcast %cst_5 : f32 to vector<16x1xf32>
    %16 = arith.addf %12, %15 : vector<16x1xf32>
    %17 = math.rsqrt %16 : vector<16x1xf32>
    %18 = vector.broadcast %17 : vector<16x1xf32> to vector<16x32xf32>
    %19 = arith.mulf %14, %18 : vector<16x32xf32>
    %c0_6 = arith.constant 0 : index
    %c0_7 = arith.constant 0 : index
    %20 = vector.load %arg2[%c0_6, %c0_7] : memref<1x32xf32, #tpu.memory_space<vmem>>, vector<1x32xf32>
    %21 = vector.broadcast %20 : vector<1x32xf32> to vector<16x32xf32>
    %22 = arith.mulf %19, %21 : vector<16x32xf32>
    %c0_8 = arith.constant 0 : index
    %c0_9 = arith.constant 0 : index
    %23 = vector.load %arg3[%c0_8, %c0_9] : memref<1x32xf32, #tpu.memory_space<vmem>>, vector<1x32xf32>
    %24 = vector.broadcast %23 : vector<1x32xf32> to vector<16x32xf32>
    %25 = arith.addf %22, %24 : vector<16x32xf32>
    %26 = arith.truncf %25 : vector<16x32xf32> to vector<16x32xbf16>
    %c0_10 = arith.constant 0 : index
    %c0_11 = arith.constant 0 : index
    %27 = vector.load %arg4[%c0_10, %c0_11] : memref<32x96xbf16, #tpu.memory_space<vmem>>, vector<32x96xbf16>
    %cst_12 = arith.constant dense<0.000000e+00> : vector<16x96xf32>
    %28 = tpu.matmul %26, %27, %cst_12 {dimension_numbers = #tpu.dot_dimension_numbers<[1], [0], [0], [1], [0, 0, 1, 1], [], []>} : vector<16x32xbf16>, vector<32x96xbf16>, vector<16x96xf32> -> vector<16x96xf32>
    %c0_13 = arith.constant 0 : index
    %c0_14 = arith.constant 0 : index
    %29 = vector.load %arg5[%c0_13, %c0_14] : memref<1x96xf32, #tpu.memory_space<vmem>>, vector<1x96xf32>
    %30 = vector.broadcast %29 : vector<1x96xf32> to vector<16x96xf32>
    %31 = arith.addf %28, %30 : vector<16x96xf32>
    %32 = vector.shape_cast %31 : vector<16x96xf32> to vector<1x16x96xf32>
    %33 = vector.extract_strided_slice %32 {offsets = [0, 0, 0], sizes = [1, 16, 8], strides = [1, 1, 1]} : vector<1x16x96xf32> to vector<1x16x8xf32>
    %34 = arith.truncf %33 : vector<1x16x8xf32> to vector<1x16x8xbf16>
    %35 = vector.extract_strided_slice %32 {offsets = [0, 0, 32], sizes = [1, 16, 8], strides = [1, 1, 1]} : vector<1x16x96xf32> to vector<1x16x8xf32>
    %36 = arith.truncf %35 : vector<1x16x8xf32> to vector<1x16x8xbf16>
    %37 = vector.extract_strided_slice %32 {offsets = [0, 0, 64], sizes = [1, 16, 8], strides = [1, 1, 1]} : vector<1x16x96xf32> to vector<1x16x8xf32>
    %38 = arith.truncf %37 : vector<1x16x8xf32> to vector<1x16x8xbf16>
    "tpu.trace_start"() <{level = 10 : i32, message = "bqd,bkd->bqk"}> : () -> ()
    %cst_15 = arith.constant dense<0.000000e+00> : vector<1x16x16xf32>
    %39 = tpu.matmul %34, %36, %cst_15 {dimension_numbers = #tpu.dot_dimension_numbers<[2], [2], [1], [1], [0, 0, 0, 1, 1, 1], [0], [0]>} : vector<1x16x8xbf16>, vector<1x16x8xbf16>, vector<1x16x16xf32> -> vector<1x16x16xf32>
    "tpu.trace_stop"() : () -> ()
    %cst_16 = arith.constant dense<0xFF800000> : vector<1x16xf32>
    %40 = vector.multi_reduction <maximumf>, %39, %cst_16 [2] : vector<1x16x16xf32> to vector<1x16xf32>
    %41 = vector.shape_cast %40 : vector<1x16xf32> to vector<1x16x1xf32>
    %42 = vector.broadcast %41 : vector<1x16x1xf32> to vector<1x16x16xf32>
    %43 = arith.subf %39, %42 : vector<1x16x16xf32>
    %44 = math.exp %43 : vector<1x16x16xf32>
    %cst_17 = arith.constant dense<0.000000e+00> : vector<1x16xf32>
    %45 = vector.multi_reduction <add>, %44, %cst_17 [2] : vector<1x16x16xf32> to vector<1x16xf32>
    %46 = vector.shape_cast %45 : vector<1x16xf32> to vector<1x16x1xf32>
    %47 = arith.truncf %44 : vector<1x16x16xf32> to vector<1x16x16xbf16>
    "tpu.trace_start"() <{level = 10 : i32, message = "bqk,bkd->bqd"}> : () -> ()
    %cst_18 = arith.constant dense<0.000000e+00> : vector<1x16x8xf32>
    %48 = tpu.matmul %47, %38, %cst_18 {dimension_numbers = #tpu.dot_dimension_numbers<[2], [1], [1], [2], [0, 0, 0, 1, 1, 2], [0], [0]>} : vector<1x16x16xbf16>, vector<1x16x8xbf16>, vector<1x16x8xf32> -> vector<1x16x8xf32>
    "tpu.trace_stop"() : () -> ()
    %49 = tpu.reciprocal %46 {approx = true} : vector<1x16x1xf32> -> vector<1x16x1xf32>
    %50 = vector.broadcast %49 : vector<1x16x1xf32> to vector<1x16x8xf32>
    %51 = arith.mulf %48, %50 : vector<1x16x8xf32>
    %52 = vector.shape_cast %51 : vector<1x16x8xf32> to vector<16x8xf32>
    %c0_19 = arith.constant 0 : index
    %c0_20 = arith.constant 0 : index
    %53 = vector.load %arg9[%c0_19, %c0_20] : memref<16x32xf32, #tpu.memory_space<vmem>>, vector<16x8xf32>
    tpu.vector_store %arg9[%c0_19, %c0_20], %52 {strides = array<i32>} : memref<16x32xf32, #tpu.memory_space<vmem>>, vector<16x8xf32>,
    %54 = vector.extract_strided_slice %32 {offsets = [0, 0, 8], sizes = [1, 16, 8], strides = [1, 1, 1]} : vector<1x16x96xf32> to vector<1x16x8xf32>
    %55 = arith.truncf %54 : vector<1x16x8xf32> to vector<1x16x8xbf16>
    %56 = vector.extract_strided_slice %32 {offsets = [0, 0, 40], sizes = [1, 16, 8], strides = [1, 1, 1]} : vector<1x16x96xf32> to vector<1x16x8xf32>
    %57 = arith.truncf %56 : vector<1x16x8xf32> to vector<1x16x8xbf16>
    %58 = vector.extract_strided_slice %32 {offsets = [0, 0, 72], sizes = [1, 16, 8], strides = [1, 1, 1]} : vector<1x16x96xf32> to vector<1x16x8xf32>
    %59 = arith.truncf %58 : vector<1x16x8xf32> to vector<1x16x8xbf16>
    "tpu.trace_start"() <{level = 10 : i32, message = "bqd,bkd->bqk"}> : () -> ()
    %cst_21 = arith.constant dense<0.000000e+00> : vector<1x16x16xf32>
    %60 = tpu.matmul %55, %57, %cst_21 {dimension_numbers = #tpu.dot_dimension_numbers<[2], [2], [1], [1], [0, 0, 0, 1, 1, 1], [0], [0]>} : vector<1x16x8xbf16>, vector<1x16x8xbf16>, vector<1x16x16xf32> -> vector<1x16x16xf32>
    "tpu.trace_stop"() : () -> ()
    %cst_22 = arith.constant dense<0xFF800000> : vector<1x16xf32>
    %61 = vector.multi_reduction <maximumf>, %60, %cst_22 [2] : vector<1x16x16xf32> to vector<1x16xf32>
    %62 = vector.shape_cast %61 : vector<1x16xf32> to vector<1x16x1xf32>
    %63 = vector.broadcast %62 : vector<1x16x1xf32> to vector<1x16x16xf32>
    %64 = arith.subf %60, %63 : vector<1x16x16xf32>
    %65 = math.exp %64 : vector<1x16x16xf32>
    %cst_23 = arith.constant dense<0.000000e+00> : vector<1x16xf32>
    %66 = vector.multi_reduction <add>, %65, %cst_23 [2] : vector<1x16x16xf32> to vector<1x16xf32>
    %67 = vector.shape_cast %66 : vector<1x16xf32> to vector<1x16x1xf32>
    %68 = arith.truncf %65 : vector<1x16x16xf32> to vector<1x16x16xbf16>
    "tpu.trace_start"() <{level = 10 : i32, message = "bqk,bkd->bqd"}> : () -> ()
    %cst_24 = arith.constant dense<0.000000e+00> : vector<1x16x8xf32>
    %69 = tpu.matmul %68, %59, %cst_24 {dimension_numbers = #tpu.dot_dimension_numbers<[2], [1], [1], [2], [0, 0, 0, 1, 1, 2], [0], [0]>} : vector<1x16x16xbf16>, vector<1x16x8xbf16>, vector<1x16x8xf32> -> vector<1x16x8xf32>
    "tpu.trace_stop"() : () -> ()
    %70 = tpu.reciprocal %67 {approx = true} : vector<1x16x1xf32> -> vector<1x16x1xf32>
    %71 = vector.broadcast %70 : vector<1x16x1xf32> to vector<1x16x8xf32>
    %72 = arith.mulf %69, %71 : vector<1x16x8xf32>
    %73 = vector.shape_cast %72 : vector<1x16x8xf32> to vector<16x8xf32>
    %c0_25 = arith.constant 0 : index
    %c8 = arith.constant 8 : index
    %74 = vector.load %arg9[%c0_25, %c8] : memref<16x32xf32, #tpu.memory_space<vmem>>, vector<16x8xf32>
    tpu.vector_store %arg9[%c0_25, %c8], %73 {strides = array<i32>} : memref<16x32xf32, #tpu.memory_space<vmem>>, vector<16x8xf32>,
    %75 = vector.extract_strided_slice %32 {offsets = [0, 0, 16], sizes = [1, 16, 8], strides = [1, 1, 1]} : vector<1x16x96xf32> to vector<1x16x8xf32>
    %76 = arith.truncf %75 : vector<1x16x8xf32> to vector<1x16x8xbf16>
    %77 = vector.extract_strided_slice %32 {offsets = [0, 0, 48], sizes = [1, 16, 8], strides = [1, 1, 1]} : vector<1x16x96xf32> to vector<1x16x8xf32>
    %78 = arith.truncf %77 : vector<1x16x8xf32> to vector<1x16x8xbf16>
    %79 = vector.extract_strided_slice %32 {offsets = [0, 0, 80], sizes = [1, 16, 8], strides = [1, 1, 1]} : vector<1x16x96xf32> to vector<1x16x8xf32>
    %80 = arith.truncf %79 : vector<1x16x8xf32> to vector<1x16x8xbf16>
    "tpu.trace_start"() <{level = 10 : i32, message = "bqd,bkd->bqk"}> : () -> ()
    %cst_26 = arith.constant dense<0.000000e+00> : vector<1x16x16xf32>
    %81 = tpu.matmul %76, %78, %cst_26 {dimension_numbers = #tpu.dot_dimension_numbers<[2], [2], [1], [1], [0, 0, 0, 1, 1, 1], [0], [0]>} : vector<1x16x8xbf16>, vector<1x16x8xbf16>, vector<1x16x16xf32> -> vector<1x16x16xf32>
    "tpu.trace_stop"() : () -> ()
    %cst_27 = arith.constant dense<0xFF800000> : vector<1x16xf32>
    %82 = vector.multi_reduction <maximumf>, %81, %cst_27 [2] : vector<1x16x16xf32> to vector<1x16xf32>
    %83 = vector.shape_cast %82 : vector<1x16xf32> to vector<1x16x1xf32>
    %84 = vector.broadcast %83 : vector<1x16x1xf32> to vector<1x16x16xf32>
    %85 = arith.subf %81, %84 : vector<1x16x16xf32>
    %86 = math.exp %85 : vector<1x16x16xf32>
    %cst_28 = arith.constant dense<0.000000e+00> : vector<1x16xf32>
    %87 = vector.multi_reduction <add>, %86, %cst_28 [2] : vector<1x16x16xf32> to vector<1x16xf32>
    %88 = vector.shape_cast %87 : vector<1x16xf32> to vector<1x16x1xf32>
    %89 = arith.truncf %86 : vector<1x16x16xf32> to vector<1x16x16xbf16>
    "tpu.trace_start"() <{level = 10 : i32, message = "bqk,bkd->bqd"}> : () -> ()
    %cst_29 = arith.constant dense<0.000000e+00> : vector<1x16x8xf32>
    %90 = tpu.matmul %89, %80, %cst_29 {dimension_numbers = #tpu.dot_dimension_numbers<[2], [1], [1], [2], [0, 0, 0, 1, 1, 2], [0], [0]>} : vector<1x16x16xbf16>, vector<1x16x8xbf16>, vector<1x16x8xf32> -> vector<1x16x8xf32>
    "tpu.trace_stop"() : () -> ()
    %91 = tpu.reciprocal %88 {approx = true} : vector<1x16x1xf32> -> vector<1x16x1xf32>
    %92 = vector.broadcast %91 : vector<1x16x1xf32> to vector<1x16x8xf32>
    %93 = arith.mulf %90, %92 : vector<1x16x8xf32>
    %94 = vector.shape_cast %93 : vector<1x16x8xf32> to vector<16x8xf32>
    %c0_30 = arith.constant 0 : index
    %c16 = arith.constant 16 : index
    %95 = vector.load %arg9[%c0_30, %c16] : memref<16x32xf32, #tpu.memory_space<vmem>>, vector<16x8xf32>
    tpu.vector_store %arg9[%c0_30, %c16], %94 {strides = array<i32>} : memref<16x32xf32, #tpu.memory_space<vmem>>, vector<16x8xf32>,
    %96 = vector.extract_strided_slice %32 {offsets = [0, 0, 24], sizes = [1, 16, 8], strides = [1, 1, 1]} : vector<1x16x96xf32> to vector<1x16x8xf32>
    %97 = arith.truncf %96 : vector<1x16x8xf32> to vector<1x16x8xbf16>
    %98 = vector.extract_strided_slice %32 {offsets = [0, 0, 56], sizes = [1, 16, 8], strides = [1, 1, 1]} : vector<1x16x96xf32> to vector<1x16x8xf32>
    %99 = arith.truncf %98 : vector<1x16x8xf32> to vector<1x16x8xbf16>
    %100 = vector.extract_strided_slice %32 {offsets = [0, 0, 88], sizes = [1, 16, 8], strides = [1, 1, 1]} : vector<1x16x96xf32> to vector<1x16x8xf32>
    %101 = arith.truncf %100 : vector<1x16x8xf32> to vector<1x16x8xbf16>
    "tpu.trace_start"() <{level = 10 : i32, message = "bqd,bkd->bqk"}> : () -> ()
    %cst_31 = arith.constant dense<0.000000e+00> : vector<1x16x16xf32>
    %102 = tpu.matmul %97, %99, %cst_31 {dimension_numbers = #tpu.dot_dimension_numbers<[2], [2], [1], [1], [0, 0, 0, 1, 1, 1], [0], [0]>} : vector<1x16x8xbf16>, vector<1x16x8xbf16>, vector<1x16x16xf32> -> vector<1x16x16xf32>
    "tpu.trace_stop"() : () -> ()
    %cst_32 = arith.constant dense<0xFF800000> : vector<1x16xf32>
    %103 = vector.multi_reduction <maximumf>, %102, %cst_32 [2] : vector<1x16x16xf32> to vector<1x16xf32>
    %104 = vector.shape_cast %103 : vector<1x16xf32> to vector<1x16x1xf32>
    %105 = vector.broadcast %104 : vector<1x16x1xf32> to vector<1x16x16xf32>
    %106 = arith.subf %102, %105 : vector<1x16x16xf32>
    %107 = math.exp %106 : vector<1x16x16xf32>
    %cst_33 = arith.constant dense<0.000000e+00> : vector<1x16xf32>
    %108 = vector.multi_reduction <add>, %107, %cst_33 [2] : vector<1x16x16xf32> to vector<1x16xf32>
    %109 = vector.shape_cast %108 : vector<1x16xf32> to vector<1x16x1xf32>
    %110 = arith.truncf %107 : vector<1x16x16xf32> to vector<1x16x16xbf16>
    "tpu.trace_start"() <{level = 10 : i32, message = "bqk,bkd->bqd"}> : () -> ()
    %cst_34 = arith.constant dense<0.000000e+00> : vector<1x16x8xf32>
    %111 = tpu.matmul %110, %101, %cst_34 {dimension_numbers = #tpu.dot_dimension_numbers<[2], [1], [1], [2], [0, 0, 0, 1, 1, 2], [0], [0]>} : vector<1x16x16xbf16>, vector<1x16x8xbf16>, vector<1x16x8xf32> -> vector<1x16x8xf32>
    "tpu.trace_stop"() : () -> ()
    %112 = tpu.reciprocal %109 {approx = true} : vector<1x16x1xf32> -> vector<1x16x1xf32>
    %113 = vector.broadcast %112 : vector<1x16x1xf32> to vector<1x16x8xf32>
    %114 = arith.mulf %111, %113 : vector<1x16x8xf32>
    %115 = vector.shape_cast %114 : vector<1x16x8xf32> to vector<16x8xf32>
    %c0_35 = arith.constant 0 : index
    %c24 = arith.constant 24 : index
    %116 = vector.load %arg9[%c0_35, %c24] : memref<16x32xf32, #tpu.memory_space<vmem>>, vector<16x8xf32>
    tpu.vector_store %arg9[%c0_35, %c24], %115 {strides = array<i32>} : memref<16x32xf32, #tpu.memory_space<vmem>>, vector<16x8xf32>,
    %c0_36 = arith.constant 0 : index
    %c0_37 = arith.constant 0 : index
    %117 = vector.load %arg9[%c0_36, %c0_37] : memref<16x32xf32, #tpu.memory_space<vmem>>, vector<16x32xf32>
    %118 = arith.truncf %117 : vector<16x32xf32> to vector<16x32xbf16>
    %c0_38 = arith.constant 0 : index
    %c0_39 = arith.constant 0 : index
    %119 = vector.load %arg6[%c0_38, %c0_39] : memref<32x32xbf16, #tpu.memory_space<vmem>>, vector<32x32xbf16>
    %cst_40 = arith.constant dense<0.000000e+00> : vector<16x32xf32>
    %120 = tpu.matmul %118, %119, %cst_40 {dimension_numbers = #tpu.dot_dimension_numbers<[1], [0], [0], [1], [0, 0, 1, 1], [], []>} : vector<16x32xbf16>, vector<32x32xbf16>, vector<16x32xf32> -> vector<16x32xf32>
    %c0_41 = arith.constant 0 : index
    %c0_42 = arith.constant 0 : index
    %121 = vector.load %arg7[%c0_41, %c0_42] : memref<1x32xf32, #tpu.memory_space<vmem>>, vector<1x32xf32>
    %122 = vector.broadcast %121 : vector<1x32xf32> to vector<16x32xf32>
    %123 = arith.addf %120, %122 : vector<16x32xf32>
    %124 = vector.shape_cast %123 : vector<16x32xf32> to vector<1x16x32xf32>
    %125 = arith.addf %0, %124 : vector<1x16x32xf32>
    %c0_43 = arith.constant 0 : index
    %c0_44 = arith.constant 0 : index
    %c0_45 = arith.constant 0 : index
    %126 = vector.load %arg8[%c0_43, %c0_44, %c0_45] : memref<1x16x32xf32, #tpu.memory_space<vmem>>, vector<1x16x32xf32>
    tpu.vector_store %arg8[%c0_43, %c0_44, %c0_45], %125 {strides = array<i32>} : memref<1x16x32xf32, #tpu.memory_space<vmem>>, vector<1x16x32xf32>,
    return
  }
  func.func @transform_0(%arg0: i32) -> (i32, i32, i32) {
    %c0_i32 = arith.constant 0 : i32
    %c0_i32_0 = arith.constant 0 : i32
    %c0_i32_1 = arith.constant 0 : i32
    return %arg0, %c0_i32, %c0_i32_0 : i32, i32, i32
  }
  func.func @transform_1(%arg0: i32) -> (i32, i32) {
    %c0_i32 = arith.constant 0 : i32
    %c0_i32_0 = arith.constant 0 : i32
    %c0_i32_1 = arith.constant 0 : i32
    return %c0_i32, %c0_i32_0 : i32, i32
  }
  func.func @transform_2(%arg0: i32) -> (i32, i32) {
    %c0_i32 = arith.constant 0 : i32
    %c0_i32_0 = arith.constant 0 : i32
    %c0_i32_1 = arith.constant 0 : i32
    return %c0_i32, %c0_i32_0 : i32, i32
  }
  func.func @transform_3(%arg0: i32) -> (i32, i32) {
    %c0_i32 = arith.constant 0 : i32
    %c0_i32_0 = arith.constant 0 : i32
    %c0_i32_1 = arith.constant 0 : i32
    return %c0_i32, %c0_i32_0 : i32, i32
  }
  func.func @transform_4(%arg0: i32) -> (i32, i32) {
    %c0_i32 = arith.constant 0 : i32
    %c0_i32_0 = arith.constant 0 : i32
    %c0_i32_1 = arith.constant 0 : i32
    return %c0_i32, %c0_i32_0 : i32, i32
  }
  func.func @transform_5(%arg0: i32) -> (i32, i32) {
    %c0_i32 = arith.constant 0 : i32
    %c0_i32_0 = arith.constant 0 : i32
    %c0_i32_1 = arith.constant 0 : i32
    return %c0_i32, %c0_i32_0 : i32, i32
  }
  func.func @transform_6(%arg0: i32) -> (i32, i32) {
    %c0_i32 = arith.constant 0 : i32
    %c0_i32_0 = arith.constant 0 : i32
    %c0_i32_1 = arith.constant 0 : i32
    return %c0_i32, %c0_i32_0 : i32, i32
  }
  func.func @transform_7(%arg0: i32) -> (i32, i32, i32) {
    %c0_i32 = arith.constant 0 : i32
    %c0_i32_0 = arith.constant 0 : i32
    %c0_i32_1 = arith.constant 0 : i32
    return %arg0, %c0_i32, %c0_i32_0 : i32, i32, i32
  }
}

</mosaic_0001>

<llo_original>
// kernel: tpu_custom_call.1
$region0: #{tpu_custom_call.1}
  #allocation0 [shape = 'u32[]', space=smem, size = 0x4, offset = 0x4, fixed_abs, tag = 'smem constant byte address 0x4 - core index']
  #allocation1 [shape = 'u32[72,128]{1,0:T(1,128)}', space=vmem, size = 0x9000, scoped, tag = 'internal scratch']
  #allocation2 [shape = 'f32[16,32]{1,0:T(8,128)}', space=vmem, size = 0x2000, scoped, tag = 'scratch operand']
  %s0 = inlined_call_operand.hbm [shape: f32[2,16,32], index: 0, kind: input, shape index: {}]
  %s1 = inlined_call_operand.hbm [shape: f32[1,32], index: 1, kind: input, shape index: {}]
  %s2 = inlined_call_operand.vmem [shape: f32[1,32], index: 2, kind: input, shape index: {}]
  %s3 = inlined_call_operand.hbm [shape: bf16[32,96], index: 3, kind: input, shape index: {}]
  %s4 = inlined_call_operand.vmem [shape: f32[1,96], index: 4, kind: input, shape index: {}]
  %s5 = inlined_call_operand.hbm [shape: bf16[32,32], index: 5, kind: input, shape index: {}]
  %s6 = inlined_call_operand.vmem [shape: f32[1,32], index: 6, kind: input, shape index: {}]
  %s7 = inlined_call_operand.hbm [shape: f32[2,16,32], index: 7, kind: output, shape index: {}]
  %s8 = sld [smem:[#allocation0]]
  $region77: #{tpu_custom_call.1} parent=0
    _
  %s10 = ssub.s32 1, %s8
  %s11 = scalar_select 0, %s10, %s8
  $region1: #{tpu_custom_call.1} parent=0
    #allocation3 [shape = 'u8[16384]{0}', space=vmem, size = 0x4000, scoped, tag = 'input window, operand 0']
    #allocation4 [shape = 's32[2]{0}', space=sflag, size = 0x8, scoped, tag = 'scoped memory for tpu_custom_call.1']
    #allocation5 [shape = 's32[2]{0}', space=sflag, size = 0x8, scoped, tag = 'scoped memory for tpu_custom_call.1']
    #allocation6 [shape = 'u8[512]{0}', space=vmem, size = 0x400, scoped, tag = 'input window, operand 1, single buffered']
    #allocation7 [shape = 's32[1]{0}', space=sflag, size = 0x4, scoped, tag = 'scoped memory for tpu_custom_call.1']
    #allocation8 [shape = 'u8[8192]{0}', space=vmem, size = 0x2000, scoped, tag = 'input window, operand 3, single buffered']
    #allocation9 [shape = 'u8[8192]{0}', space=vmem, size = 0x2000, scoped, tag = 'input window, operand 5, single buffered']
    #allocation10 [shape = 's32[1]{0}', space=sflag, size = 0x4, scoped, tag = 'scoped memory for tpu_custom_call.1']
    #allocation11 [shape = 'u8[16384]{0}', space=vmem, size = 0x4000, scoped, tag = 'output window, operand 0']
    %12 = vsyncpa [#allocation4], 0
    %s13 = scalar_lea.sflag [#allocation4], 1
    %14 = vsyncpa %s13, 0
    %15 = vsyncpa [#allocation7], 0
    %16 = vsyncpa [#allocation10], 0
    %17 = vsyncpa [#allocation5], 0
    %s18 = scalar_lea.sflag [#allocation5], 1
    %19 = vsyncpa %s18, 0
    loop: start=0, step=1, limit=4
    $region2: #{tpu_custom_call.1} parent=1 // loop_pre_header
      _
    $region3: #{tpu_custom_call.1} parent=1 // loop_header
      %s21 = sphi 0, %s25
      %p22 = scmp.ge.s32.totalorder %s21, 4
      %s31 = sphi 0, %s33
      %s34 = sphi 0, %s31
      %s35 = sphi 0, %s34
      %s51 = sphi 0, %s35
      %s55 = sphi 0, %s55
      %s57 = sphi 0, %s55
      %s58 = sphi 0, %s57
      %s72 = sphi 0, %s58
      %s76 = sphi 0, %s76
      %s78 = sphi 0, %s76
      %s79 = sphi 0, %s78
      %s93 = sphi 0, %s79
      %s97 = sphi 0, %s97
      %s99 = sphi 0, %s97
      %s100 = sphi 0, %s99
      %s114 = sphi 0, %s100
      %s118 = sphi 0, %s118
      %s120 = sphi 0, %s118
      %s121 = sphi 0, %s120
      %s135 = sphi 0, %s121
      %s139 = sphi 0, %s139
      %s141 = sphi 0, %s139
      %s142 = sphi 0, %s141
      %s156 = sphi 0, %s142
      %s160 = sphi 0, %s160
      %s162 = sphi 0, %s160
      %s163 = sphi 0, %s162
      %s177 = sphi 0, %s163
      %s183 = sphi 0, %s185
      %s186 = sphi 0, %s183
      %s187 = sphi 0, %s186
      %s203 = sphi 0, %s187
    $region4: #{tpu_custom_call.1} parent=1 // loop_header_branch
      %24 = sbr.rel (%p22) target = $region8
    $region5: #{tpu_custom_call.1} parent=1 // loop_body
      %s26 = ssub.s32 %s21, 1
      %s27 = ssub.s32 %s21, 2
      %s28 = sadd.s32 %s21, 1
      %s29 = ssub.s32 %s21, %s28
      %p30 = scmp.eq.s32.totalorder %s29, 0
      %s32 = sadd.s32 %s31, 1
      %s33 = scalar_select %p30, %s31, %s32
      %p36 = pneg %p30
      %p37 = scmp.eq.s32.totalorder %s21, 1
      %p38 = por %p36, %p37
      %p39 = scmp.ne.s32.totalorder %s31, %s34
      %p40 = scmp.eq.s32.totalorder %s21, 0
      %p41 = por %p39, %p40
      %p42 = scmp.ne.s32.totalorder %s31, %s34
      %p43 = scmp.eq.s32.totalorder %s26, 1
      %p44 = por %p42, %p43
      %p45 = scmp.ne.s32.totalorder %s34, %s35
      %p46 = scmp.eq.s32.totalorder %s26, 0
      %p47 = por %p45, %p46
      %p48 = scmp.ne.s32.totalorder %s34, %s35
      %p49 = scmp.eq.s32.totalorder %s27, 1
      %p50 = por %p48, %p49
      %p52 = scmp.ne.s32.totalorder %s35, %s51
      %p53 = scmp.eq.s32.totalorder %s27, 0
      %p54 = por %p52, %p53
      %s56 = sadd.s32 %s55, 1
      %p59 = scmp.eq.s32.totalorder %s21, 1
      %p60 = scmp.ne.s32.totalorder %s55, %s57
      %p61 = scmp.eq.s32.totalorder %s21, 0
      %p62 = por %p60, %p61
      %p63 = scmp.ne.s32.totalorder %s55, %s57
      %p64 = scmp.eq.s32.totalorder %s26, 1
      %p65 = por %p63, %p64
      %p66 = scmp.ne.s32.totalorder %s57, %s58
      %p67 = scmp.eq.s32.totalorder %s26, 0
      %p68 = por %p66, %p67
      %p69 = scmp.ne.s32.totalorder %s57, %s58
      %p70 = scmp.eq.s32.totalorder %s27, 1
      %p71 = por %p69, %p70
      %p73 = scmp.ne.s32.totalorder %s58, %s72
      %p74 = scmp.eq.s32.totalorder %s27, 0
      %p75 = por %p73, %p74
      %s77 = sadd.s32 %s76, 1
      %p80 = scmp.eq.s32.totalorder %s21, 1
      %p81 = scmp.ne.s32.totalorder %s76, %s78
      %p82 = scmp.eq.s32.totalorder %s21, 0
      %p83 = por %p81, %p82
      %p84 = scmp.ne.s32.totalorder %s76, %s78
      %p85 = scmp.eq.s32.totalorder %s26, 1
      %p86 = por %p84, %p85
      %p87 = scmp.ne.s32.totalorder %s78, %s79
      %p88 = scmp.eq.s32.totalorder %s26, 0
      %p89 = por %p87, %p88
      %p90 = scmp.ne.s32.totalorder %s78, %s79
      %p91 = scmp.eq.s32.totalorder %s27, 1
      %p92 = por %p90, %p91
      %p94 = scmp.ne.s32.totalorder %s79, %s93
      %p95 = scmp.eq.s32.totalorder %s27, 0
      %p96 = por %p94, %p95
      %s98 = sadd.s32 %s97, 1
      %p101 = scmp.eq.s32.totalorder %s21, 1
      %p102 = scmp.ne.s32.totalorder %s97, %s99
      %p103 = scmp.eq.s32.totalorder %s21, 0
      %p104 = por %p102, %p103
      %p105 = scmp.ne.s32.totalorder %s97, %s99
      %p106 = scmp.eq.s32.totalorder %s26, 1
      %p107 = por %p105, %p106
      %p108 = scmp.ne.s32.totalorder %s99, %s100
      %p109 = scmp.eq.s32.totalorder %s26, 0
      %p110 = por %p108, %p109
      %p111 = scmp.ne.s32.totalorder %s99, %s100
      %p112 = scmp.eq.s32.totalorder %s27, 1
      %p113 = por %p111, %p112
      %p115 = scmp.ne.s32.totalorder %s100, %s114
      %p116 = scmp.eq.s32.totalorder %s27, 0
      %p117 = por %p115, %p116
      %s119 = sadd.s32 %s118, 1
      %p122 = scmp.eq.s32.totalorder %s21, 1
      %p123 = scmp.ne.s32.totalorder %s118, %s120
      %p124 = scmp.eq.s32.totalorder %s21, 0
      %p125 = por %p123, %p124
      %p126 = scmp.ne.s32.totalorder %s118, %s120
      %p127 = scmp.eq.s32.totalorder %s26, 1
      %p128 = por %p126, %p127
      %p129 = scmp.ne.s32.totalorder %s120, %s121
      %p130 = scmp.eq.s32.totalorder %s26, 0
      %p131 = por %p129, %p130
      %p132 = scmp.ne.s32.totalorder %s120, %s121
      %p133 = scmp.eq.s32.totalorder %s27, 1
      %p134 = por %p132, %p133
      %p136 = scmp.ne.s32.totalorder %s121, %s135
      %p137 = scmp.eq.s32.totalorder %s27, 0
      %p138 = por %p136, %p137
      %s140 = sadd.s32 %s139, 1
      %p143 = scmp.eq.s32.totalorder %s21, 1
      %p144 = scmp.ne.s32.totalorder %s139, %s141
      %p145 = scmp.eq.s32.totalorder %s21, 0
      %p146 = por %p144, %p145
      %p147 = scmp.ne.s32.totalorder %s139, %s141
      %p148 = scmp.eq.s32.totalorder %s26, 1
      %p149 = por %p147, %p148
      %p150 = scmp.ne.s32.totalorder %s141, %s142
      %p151 = scmp.eq.s32.totalorder %s26, 0
      %p152 = por %p150, %p151
      %p153 = scmp.ne.s32.totalorder %s141, %s142
      %p154 = scmp.eq.s32.totalorder %s27, 1
      %p155 = por %p153, %p154
      %p157 = scmp.ne.s32.totalorder %s142, %s156
      %p158 = scmp.eq.s32.totalorder %s27, 0
      %p159 = por %p157, %p158
      %s161 = sadd.s32 %s160, 1
      %p164 = scmp.eq.s32.totalorder %s21, 1
      %p165 = scmp.ne.s32.totalorder %s160, %s162
      %p166 = scmp.eq.s32.totalorder %s21, 0
      %p167 = por %p165, %p166
      %p168 = scmp.ne.s32.totalorder %s160, %s162
      %p169 = scmp.eq.s32.totalorder %s26, 1
      %p170 = por %p168, %p169
      %p171 = scmp.ne.s32.totalorder %s162, %s163
      %p172 = scmp.eq.s32.totalorder %s26, 0
      %p173 = por %p171, %p172
      %p174 = scmp.ne.s32.totalorder %s162, %s163
      %p175 = scmp.eq.s32.totalorder %s27, 1
      %p176 = por %p174, %p175
      %p178 = scmp.ne.s32.totalorder %s163, %s177
      %p179 = scmp.eq.s32.totalorder %s27, 0
      %p180 = por %p178, %p179
      %s181 = ssub.s32 %s21, %s28
      %p182 = scmp.eq.s32.totalorder %s181, 0
      %s184 = sadd.s32 %s183, 1
      %s185 = scalar_select %p182, %s183, %s184
      %p188 = pneg %p182
      %p189 = scmp.eq.s32.totalorder %s21, 1
      %p190 = por %p188, %p189
      %p191 = scmp.ne.s32.totalorder %s183, %s186
      %p192 = scmp.eq.s32.totalorder %s21, 0
      %p193 = por %p191, %p192
      %p194 = scmp.ne.s32.totalorder %s183, %s186
      %p195 = scmp.eq.s32.totalorder %s26, 1
      %p196 = por %p194, %p195
      %p197 = scmp.ne.s32.totalorder %s186, %s187
      %p198 = scmp.eq.s32.totalorder %s26, 0
      %p199 = por %p197, %p198
      %p200 = scmp.ne.s32.totalorder %s186, %s187
      %p201 = scmp.eq.s32.totalorder %s27, 1
      %p202 = por %p200, %p201
      %p204 = scmp.ne.s32.totalorder %s187, %s203
      %p205 = scmp.eq.s32.totalorder %s27, 0
      %p206 = por %p204, %p205
      %p207 = scmp.le.s32.totalorder 1, %s21
      %p208 = scmp.lt.s32.totalorder %s21, 3
      %p209 = pnand %p207, %p208
      %p210 = pneg %p209
      // Predicated region
      $region9: #{tpu_custom_call.1} parent=5 // pred_check
        _
      $region10: #{tpu_custom_call.1} parent=5 // pred_check_branch
        %212 = sbr.rel (%p209) target = $region12
      $region11: #{tpu_custom_call.1} parent=5 // pred_region
        %s213 = ssub.s32 %s21, 1
        // Predicated region
        $region13: #{tpu_custom_call.1} parent=11 // pred_check
          %p214 = pneg %p68
        $region14: #{tpu_custom_call.1} parent=11 // pred_check_branch
          %216 = sbr.rel (%p214) target = $region16
        $region15: #{tpu_custom_call.1} parent=11 // pred_region
          %218 = vsyncadd [#allocation7], 0
          %s220 = sshll.u32 %s1, 4
          %s221 = int_to_ptr.hbm [resolvable:$true] %s220
          %s222 = sshll.u32 [#allocation6], 4
          %s223 = int_to_ptr.vmem [resolvable:$true] %s222
          %225 = dma.hbm_to_vmem [thread:$0]  %s221, 16, %s223, [#allocation7]
        $region16: #{tpu_custom_call.1} parent=11 // pred_fallthru
          _
        // Predicated region
        $region17: #{tpu_custom_call.1} parent=11 // pred_check
          %p226 = pneg %p89
        $region18: #{tpu_custom_call.1} parent=11 // pred_check_branch
          %228 = sbr.rel (%p226) target = $region20
        $region19: #{tpu_custom_call.1} parent=11 // pred_region
          _
        $region20: #{tpu_custom_call.1} parent=11 // pred_fallthru
          _
        // Predicated region
        $region21: #{tpu_custom_call.1} parent=11 // pred_check
          %p229 = pneg %p110
        $region22: #{tpu_custom_call.1} parent=11 // pred_check_branch
          %231 = sbr.rel (%p229) target = $region24
        $region23: #{tpu_custom_call.1} parent=11 // pred_region
          %233 = vsyncadd [#allocation7], 0
          %s234 = sshll.u32 %s3, 4
          %s235 = int_to_ptr.hbm [resolvable:$true] %s234
          %s236 = sshll.u32 [#allocation8], 4
          %s237 = int_to_ptr.vmem [resolvable:$true] %s236
          %242 = dma.hbm_to_vmem [thread:$0]  %s235, 256, %s237, [#allocation7], 64, 64, 4
        $region24: #{tpu_custom_call.1} parent=11 // pred_fallthru
          _
        // Predicated region
        $region25: #{tpu_custom_call.1} parent=11 // pred_check
          %p243 = pneg %p131
        $region26: #{tpu_custom_call.1} parent=11 // pred_check_branch
          %245 = sbr.rel (%p243) target = $region28
        $region27: #{tpu_custom_call.1} parent=11 // pred_region
          _
        $region28: #{tpu_custom_call.1} parent=11 // pred_fallthru
          _
        // Predicated region
        $region29: #{tpu_custom_call.1} parent=11 // pred_check
          %p246 = pneg %p152
        $region30: #{tpu_custom_call.1} parent=11 // pred_check_branch
          %248 = sbr.rel (%p246) target = $region32
        $region31: #{tpu_custom_call.1} parent=11 // pred_region
          %250 = vsyncadd [#allocation10], 0
          %s251 = sshll.u32 %s5, 4
          %s252 = int_to_ptr.hbm [resolvable:$true] %s251
          %s253 = sshll.u32 [#allocation9], 4
          %s254 = int_to_ptr.vmem [resolvable:$true] %s253
          %259 = dma.hbm_to_vmem [thread:$0]  %s252, 256, %s254, [#allocation10], 64, 64, 4
        $region32: #{tpu_custom_call.1} parent=11 // pred_fallthru
          _
        // Predicated region
        $region33: #{tpu_custom_call.1} parent=11 // pred_check
          %p260 = pneg %p173
        $region34: #{tpu_custom_call.1} parent=11 // pred_check_branch
          %262 = sbr.rel (%p260) target = $region36
        $region35: #{tpu_custom_call.1} parent=11 // pred_region
          _
        $region36: #{tpu_custom_call.1} parent=11 // pred_fallthru
          _
      $region12: #{tpu_custom_call.1} parent=5 // pred_fallthru
        _
      %p263 = scmp.lt.s32.totalorder %s21, 2
      // Predicated region
      $region37: #{tpu_custom_call.1} parent=5 // pred_check
        %p264 = pneg %p263
      $region38: #{tpu_custom_call.1} parent=5 // pred_check_branch
        %266 = sbr.rel (%p264) target = $region40
      $region39: #{tpu_custom_call.1} parent=5 // pred_region
        // Predicated region
        $region41: #{tpu_custom_call.1} parent=39 // pred_check
          %p267 = pneg %p41
        $region42: #{tpu_custom_call.1} parent=39 // pred_check_branch
          %269 = sbr.rel (%p267) target = $region44
        $region43: #{tpu_custom_call.1} parent=39 // pred_region
          %s270 = sand.u32 %s31, 1
          %s271 = scalar_lea.sflag [#allocation4], %s270
          %s272 = sand.u32 %s31, 1
          %s273 = smul.addr %s272, 16
          %s274 = scalar_lea.vmem [#allocation3], %s273
          %276 = vsyncadd %s271, 0
          %s277 = smul.addr %s21, 2
          %s278 = smul.addr %s277, 8
          %s279 = scalar_lea.hbm %s0, %s278
          %s280 = sshll.u32 %s279, 4
          %s281 = int_to_ptr.hbm [resolvable:$true] %s280
          %s282 = sshll.u32 %s274, 4
          %s283 = int_to_ptr.vmem [resolvable:$true] %s282
          %288 = dma.hbm_to_vmem [thread:$0]  %s281, 256, %s283, %s271, 128, 128, 8
        $region44: #{tpu_custom_call.1} parent=39 // pred_fallthru
          _
      $region40: #{tpu_custom_call.1} parent=5 // pred_fallthru
        _
      %p289 = scmp.le.s32.totalorder 1, %s21
      %p290 = scmp.lt.s32.totalorder %s21, 3
      %p291 = pnand %p289, %p290
      %p292 = pneg %p291
      // Predicated region
      $region45: #{tpu_custom_call.1} parent=5 // pred_check
        _
      $region46: #{tpu_custom_call.1} parent=5 // pred_check_branch
        %294 = sbr.rel (%p291) target = $region48
      $region47: #{tpu_custom_call.1} parent=5 // pred_region
        %s295 = ssub.s32 %s21, 1
        %s296 = sand.u32 %s34, 1
        %s297 = scalar_lea.sflag [#allocation4], %s296
        %s298 = sand.u32 %s34, 1
        %s299 = smul.addr %s298, 16
        %s300 = scalar_lea.vmem [#allocation3], %s299
        // Predicated region
        $region49: #{tpu_custom_call.1} parent=47 // pred_check
          %p301 = pneg %p47
        $region50: #{tpu_custom_call.1} parent=47 // pred_check_branch
          %303 = sbr.rel (%p301) target = $region52
        $region51: #{tpu_custom_call.1} parent=47 // pred_region
          %305 = dma.done %s297, 256
        $region52: #{tpu_custom_call.1} parent=47 // pred_fallthru
          _
        // Predicated region
        $region53: #{tpu_custom_call.1} parent=47 // pred_check
          %p306 = pneg %p68
        $region54: #{tpu_custom_call.1} parent=47 // pred_check_branch
          %308 = sbr.rel (%p306) target = $region56
        $region55: #{tpu_custom_call.1} parent=47 // pred_region
          %310 = dma.done [#allocation7], 16
        $region56: #{tpu_custom_call.1} parent=47 // pred_fallthru
          _
        // Predicated region
        $region57: #{tpu_custom_call.1} parent=47 // pred_check
          %p311 = pneg %p110
        $region58: #{tpu_custom_call.1} parent=47 // pred_check_branch
          %313 = sbr.rel (%p311) target = $region60
        $region59: #{tpu_custom_call.1} parent=47 // pred_region
          %315 = dma.done [#allocation7], 256
        $region60: #{tpu_custom_call.1} parent=47 // pred_fallthru
          _
        // Predicated region
        $region61: #{tpu_custom_call.1} parent=47 // pred_check
          %p316 = pneg %p152
        $region62: #{tpu_custom_call.1} parent=47 // pred_check_branch
          %318 = sbr.rel (%p316) target = $region64
        $region63: #{tpu_custom_call.1} parent=47 // pred_region
          %320 = dma.done [#allocation10], 256
        $region64: #{tpu_custom_call.1} parent=47 // pred_fallthru
          _
        %s321 = sand.u32 %s34, 1
        %s322 = scalar_lea.sflag [#allocation4], %s321
        %s323 = sand.u32 %s34, 1
        %s324 = smul.addr %s323, 16
        %s325 = scalar_lea.vmem [#allocation3], %s324
        %p326 = pneg %p47
        %p327 = pneg %p44
        %p328 = pneg %p68
        %p329 = pneg %p65
        %p330 = pneg %p89
        %p331 = pneg %p86
        %p332 = pneg %p110
        %p333 = pneg %p107
        %p334 = pneg %p131
        %p335 = pneg %p128
        %p336 = pneg %p152
        %p337 = pneg %p149
        %p338 = pneg %p173
        %p339 = pneg %p170
        %p340 = pneg %p199
        %p341 = pneg %p196
        %s342 = sand.u32 %s186, 1
        %s343 = scalar_lea.sflag [#allocation5], %s342
        %s344 = sand.u32 %s186, 1
        %s345 = smul.addr %s344, 16
        %s346 = scalar_lea.vmem [#allocation11], %s345
        %v348 = vld [vmem:[%s300] sm:$0xff]
        %v349 = vld [vmem:[%s300 + $0x8] sm:$0xff]
        %vm350 = vcmask 261120
        %v351 = vsel %vm350, %v348, 0.0
        %352 = vadd.xlane.f32.xlu0 %v351
        %v353 = vpop.xlane.xlu0 %352
        %v354 = vsel %vm350, %v349, 0.0
        %355 = vadd.xlane.f32.xlu0 %v354
        %v356 = vpop.xlane.xlu0 %355
        %v357 = vrcp.pop 32.0
        %v358 = vmul.f32 32.0, %v357
        %v359 = vsub.f32 1.0, %v358
        %v360 = vmul.f32 %v357, %v359
        %v361 = vadd.f32 %v357, %v360
        %vm362 = vweird.f32 %v357
        %v363 = vsel %vm362, %v357, %v361
        %v364 = vmul.f32 %v353, %v363
        %v365 = vmul.f32 %v356, %v363
        %v366 = vsub.f32 %v348, %v364
        %v367 = vsub.f32 %v349, %v365
        %v368 = vmul.f32 %v366, %v366
        %v369 = vmul.f32 %v367, %v367
        %v370 = vsel %vm350, %v368, 0.0
        %371 = vadd.xlane.f32.xlu0 %v370
        %v372 = vpop.xlane.xlu0 %371
        %v373 = vsel %vm350, %v369, 0.0
        %374 = vadd.xlane.f32.xlu0 %v373
        %v375 = vpop.xlane.xlu0 %374
        %v376 = vmul.f32 %v372, %v363
        %v377 = vmul.f32 %v375, %v363
        %v378 = vadd.f32 %v376, 1e-05
        %v379 = vadd.f32 %v377, 1e-05
        %v380 = vrsqrt.pop %v378
        %v381 = vmul.f32 %v380, %v378
        %v382 = vmul.f32 %v381, %v380
        %v383 = vmul.f32 0.5, %v382
        %v384 = vsub.f32 1.5, %v383
        %v385 = vmul.f32 %v380, %v384
        %vm386 = vweird.f32 %v378
        %vm387 = vweird.f32 %v380
        %vm388 = vmor %vm386, %vm387
        %v389 = vsel %vm388, %v380, %v385
        %v390 = vrsqrt.pop %v379
        %v391 = vmul.f32 %v390, %v379
        %v392 = vmul.f32 %v391, %v390
        %v393 = vmul.f32 0.5, %v392
        %v394 = vsub.f32 1.5, %v393
        %v395 = vmul.f32 %v390, %v394
        %vm396 = vweird.f32 %v379
        %vm397 = vweird.f32 %v390
        %vm398 = vmor %vm396, %vm397
        %v399 = vsel %vm398, %v390, %v395
        %v400 = vmul.f32 %v366, %v389
        %v401 = vmul.f32 %v367, %v399
        %v402 = vld [vmem:[#allocation6] sm:$0x1]
        %v404 = vperm.slane %v402, 0
        %v406 = vmul.f32 %v400, %v404
        %v407 = vmul.f32 %v401, %v404
        %v408 = vld [vmem:[%s2] sm:$0x1]
        %v410 = vperm.slane %v408, 0
        %v412 = vadd.f32 %v406, %v410
        %v413 = vadd.f32 %v407, %v410
        %v414 = vpack.c.bf16 %v413, %v412
        %v415 = vld [vmem:[#allocation8] sm:$0xf]
        %v416 = vld [vmem:[#allocation8 + $0x4] sm:$0xf]
        %v417 = vld [vmem:[#allocation8 + $0x8] sm:$0xf]
        %v418 = vld [vmem:[#allocation8 + $0xc] sm:$0xf]
        %v419 = vld [vmem:[%s4] sm:$0x1]
        %v421 = vperm.slane %v419, 0
        %v427 = vunpack.c.l.b16 %v415
        %v428 = vunpack.c.l.b16 %v416
        %v429 = vunpack.c.l.b16 %v417
        %v430 = vunpack.c.l.b16 %v418
        %v431 = vpack.c.b16 %v428, %v427
        %v432 = vpack.c.b16 %v430, %v429
        %v436 = vsel %vm350, %v414, 0
        %438 = vmatpush.bf16.msra.mxu0 0
        %439 = vmatpush.bf16.msra.mxu0 0
        %440 = vmatpush.bf16.msra.mxu0 0
        %441 = vmatpush.bf16.msra.mxu0 0
        %442 = vmatpush.bf16.msra.mxu0 0
        %443 = vmatpush.bf16.msra.mxu0 0
        %444 = vmatpush.bf16.msra.mxu0 %v432
        %445 = vmatpush.bf16.msra.mxu0 %v431
        %446 = vmatmul.bf16.gmra.mxu0 %v436
        %v447 = vpop.f32.mrf.mxu0
        %v448 = vadd.f32 %v421, %v447
        %v449 = vpop.f32.mrf.mxu0
        %v450 = vadd.f32 %v421, %v449
        %451 = vdwg.mxu0
        %v452 = vpack.c.bf16 %v448, %v448
        %v453 = vpack.c.bf16 %v450, %v450
        %v456 = vunpack.c.l.b16 %v452
        %v457 = vunpack.c.l.b16 %v453
        %v458 = vpack.c.b16 %v457, %v456
        %459 = vrot.lane.b32.xlu0 %v458, 96
        %v460 = vpop.permute.xlu0 %459
        %vm461 = vcmask 64512
        %v463 = vsel %vm461, %v458, 0
        %v466 = vsel %vm461, %v460, 0
        %468 = vmatpush.bf16.xpose.msra.mxu0 0
        %469 = vmatpush.bf16.xpose.msra.mxu0 0
        %470 = vmatpush.bf16.xpose.msra.mxu0 0
        %471 = vmatpush.bf16.xpose.msra.mxu0 0
        %472 = vmatpush.bf16.xpose.msra.mxu0 0
        %473 = vmatpush.bf16.xpose.msra.mxu0 0
        %474 = vmatpush.bf16.xpose.msra.mxu0 0
        %475 = vmatpush.bf16.xpose.msra.mxu0 %v466
        %476 = vmatmul.bf16.gmra.mxu0 %v463
        %v477 = vpop.f32.mrf.mxu0
        %v478 = vadd.f32 0.0, %v477
        %v479 = vpop.f32.mrf.mxu0
        %v480 = vadd.f32 0.0, %v479
        %481 = vdwg.mxu0
        %vm482 = vcmask 130048
        %v483 = vsel %vm482, %v478, -inf
        %484 = vmax.xlane.f32.xlu0 %v483
        %v485 = vpop.xlane.xlu0 %484
        %v486 = vsel %vm482, %v480, -inf
        %487 = vmax.xlane.f32.xlu0 %v486
        %v488 = vpop.xlane.xlu0 %487
        %v489 = vsub.f32 %v478, %v485
        %v490 = vsub.f32 %v480, %v488
        %v491 = vmul.f32 %v489, 1.442695
        %v492 = vpow.pop %v491
        %v493 = vmul.f32 %v490, 1.442695
        %v494 = vpow.pop %v493
        %v495 = vsel %vm482, %v492, 0.0
        %496 = vadd.xlane.f32.xlu0 %v495
        %v497 = vpop.xlane.xlu0 %496
        %v498 = vsel %vm482, %v494, 0.0
        %499 = vadd.xlane.f32.xlu0 %v498
        %v500 = vpop.xlane.xlu0 %499
        %v501 = vpack.c.bf16 %v492, %v492
        %v502 = vpack.c.bf16 %v494, %v494
        %v505 = vunpack.c.l.b16 %v501
        %v506 = vunpack.c.l.b16 %v502
        %v507 = vpack.c.b16 %v506, %v505
        %508 = vrot.lane.b32.xlu0 %v458, 64
        %v509 = vpop.permute.xlu0 %508
        %v512 = vsel %vm482, %v507, 0
        %514 = vmatpush.bf16.msra.mxu0 0
        %515 = vmatpush.bf16.msra.mxu0 0
        %516 = vmatpush.bf16.msra.mxu0 0
        %517 = vmatpush.bf16.msra.mxu0 0
        %518 = vmatpush.bf16.msra.mxu0 0
        %519 = vmatpush.bf16.msra.mxu0 0
        %520 = vmatpush.bf16.msra.mxu0 0
        %521 = vmatpush.bf16.msra.mxu0 %v509
        %522 = vmatmul.bf16.gmra.mxu0 %v512
        %v523 = vpop.f32.mrf.mxu0
        %v524 = vadd.f32 0.0, %v523
        %v525 = vpop.f32.mrf.mxu0
        %v526 = vadd.f32 0.0, %v525
        %527 = vdwg.mxu0
        %v528 = vrcp.pop %v497
        %v529 = vrcp.pop %v500
        %v530 = vmul.f32 %v524, %v528
        %v531 = vmul.f32 %v526, %v529
        %532 = vst.msk [vmem:[#allocation2] sm:$0xff] %vm461, %v530
        %533 = vst.msk [vmem:[#allocation2 + $0x8] sm:$0xff] %vm461, %v531
        %534 = vrot.lane.b32.xlu0 %v458, 120
        %v535 = vpop.permute.xlu0 %534
        %536 = vrot.lane.b32.xlu0 %v458, 88
        %v537 = vpop.permute.xlu0 %536
        %v539 = vsel %vm461, %v535, 0
        %v542 = vsel %vm461, %v537, 0
        %544 = vmatpush.bf16.xpose.msra.mxu0 0
        %545 = vmatpush.bf16.xpose.msra.mxu0 0
        %546 = vmatpush.bf16.xpose.msra.mxu0 0
        %547 = vmatpush.bf16.xpose.msra.mxu0 0
        %548 = vmatpush.bf16.xpose.msra.mxu0 0
        %549 = vmatpush.bf16.xpose.msra.mxu0 0
        %550 = vmatpush.bf16.xpose.msra.mxu0 0
        %551 = vmatpush.bf16.xpose.msra.mxu0 %v542
        %552 = vmatmul.bf16.gmra.mxu0 %v539
        %v553 = vpop.f32.mrf.mxu0
        %v554 = vadd.f32 0.0, %v553
        %v555 = vpop.f32.mrf.mxu0
        %v556 = vadd.f32 0.0, %v555
        %557 = vdwg.mxu0
        %v558 = vsel %vm482, %v554, -inf
        %559 = vmax.xlane.f32.xlu0 %v558
        %v560 = vpop.xlane.xlu0 %559
        %v561 = vsel %vm482, %v556, -inf
        %562 = vmax.xlane.f32.xlu0 %v561
        %v563 = vpop.xlane.xlu0 %562
        %v564 = vsub.f32 %v554, %v560
        %v565 = vsub.f32 %v556, %v563
        %v566 = vmul.f32 %v564, 1.442695
        %v567 = vpow.pop %v566
        %v568 = vmul.f32 %v565, 1.442695
        %v569 = vpow.pop %v568
        %v570 = vsel %vm482, %v567, 0.0
        %571 = vadd.xlane.f32.xlu0 %v570
        %v572 = vpop.xlane.xlu0 %571
        %v573 = vsel %vm482, %v569, 0.0
        %574 = vadd.xlane.f32.xlu0 %v573
        %v575 = vpop.xlane.xlu0 %574
        %v576 = vpack.c.bf16 %v567, %v567
        %v577 = vpack.c.bf16 %v569, %v569
        %v580 = vunpack.c.l.b16 %v576
        %v581 = vunpack.c.l.b16 %v577
        %v582 = vpack.c.b16 %v581, %v580
        %583 = vrot.lane.b32.xlu0 %v458, 56
        %v584 = vpop.permute.xlu0 %583
        %v587 = vsel %vm482, %v582, 0
        %589 = vmatpush.bf16.msra.mxu0 0
        %590 = vmatpush.bf16.msra.mxu0 0
        %591 = vmatpush.bf16.msra.mxu0 0
        %592 = vmatpush.bf16.msra.mxu0 0
        %593 = vmatpush.bf16.msra.mxu0 0
        %594 = vmatpush.bf16.msra.mxu0 0
        %595 = vmatpush.bf16.msra.mxu0 0
        %596 = vmatpush.bf16.msra.mxu0 %v584
        %597 = vmatmul.bf16.gmra.mxu0 %v587
        %v598 = vpop.f32.mrf.mxu0
        %v599 = vadd.f32 0.0, %v598
        %v600 = vpop.f32.mrf.mxu0
        %v601 = vadd.f32 0.0, %v600
        %602 = vdwg.mxu0
        %v603 = vrcp.pop %v572
        %v604 = vrcp.pop %v575
        %v605 = vmul.f32 %v599, %v603
        %v606 = vmul.f32 %v601, %v604
        %609 = vrot.lane.b32.xlu0 %v605, 8
        %v610 = vpop.permute.xlu0 %609
        %611 = vrot.lane.b32.xlu0 %v606, 8
        %v612 = vpop.permute.xlu0 %611
        %vm615 = vcmask 130112
        %616 = vst.msk [vmem:[#allocation2] sm:$0xff] %vm615, %v610
        %617 = vst.msk [vmem:[#allocation2 + $0x8] sm:$0xff] %vm615, %v612
        %618 = vrot.lane.b32.xlu0 %v458, 112
        %v619 = vpop.permute.xlu0 %618
        %620 = vrot.lane.b32.xlu0 %v458, 80
        %v621 = vpop.permute.xlu0 %620
        %v623 = vsel %vm461, %v619, 0
        %v626 = vsel %vm461, %v621, 0
        %628 = vmatpush.bf16.xpose.msra.mxu0 0
        %629 = vmatpush.bf16.xpose.msra.mxu0 0
        %630 = vmatpush.bf16.xpose.msra.mxu0 0
        %631 = vmatpush.bf16.xpose.msra.mxu0 0
        %632 = vmatpush.bf16.xpose.msra.mxu0 0
        %633 = vmatpush.bf16.xpose.msra.mxu0 0
        %634 = vmatpush.bf16.xpose.msra.mxu0 0
        %635 = vmatpush.bf16.xpose.msra.mxu0 %v626
        %636 = vmatmul.bf16.gmra.mxu0 %v623
        %v637 = vpop.f32.mrf.mxu0
        %v638 = vadd.f32 0.0, %v637
        %v639 = vpop.f32.mrf.mxu0
        %v640 = vadd.f32 0.0, %v639
        %641 = vdwg.mxu0
        %v642 = vsel %vm482, %v638, -inf
        %643 = vmax.xlane.f32.xlu0 %v642
        %v644 = vpop.xlane.xlu0 %643
        %v645 = vsel %vm482, %v640, -inf
        %646 = vmax.xlane.f32.xlu0 %v645
        %v647 = vpop.xlane.xlu0 %646
        %v648 = vsub.f32 %v638, %v644
        %v649 = vsub.f32 %v640, %v647
        %v650 = vmul.f32 %v648, 1.442695
        %v651 = vpow.pop %v650
        %v652 = vmul.f32 %v649, 1.442695
        %v653 = vpow.pop %v652
        %v654 = vsel %vm482, %v651, 0.0
        %655 = vadd.xlane.f32.xlu0 %v654
        %v656 = vpop.xlane.xlu0 %655
        %v657 = vsel %vm482, %v653, 0.0
        %658 = vadd.xlane.f32.xlu0 %v657
        %v659 = vpop.xlane.xlu0 %658
        %v660 = vpack.c.bf16 %v651, %v651
        %v661 = vpack.c.bf16 %v653, %v653
        %v664 = vunpack.c.l.b16 %v660
        %v665 = vunpack.c.l.b16 %v661
        %v666 = vpack.c.b16 %v665, %v664
        %667 = vrot.lane.b32.xlu0 %v458, 48
        %v668 = vpop.permute.xlu0 %667
        %v671 = vsel %vm482, %v666, 0
        %673 = vmatpush.bf16.msra.mxu0 0
        %674 = vmatpush.bf16.msra.mxu0 0
        %675 = vmatpush.bf16.msra.mxu0 0
        %676 = vmatpush.bf16.msra.mxu0 0
        %677 = vmatpush.bf16.msra.mxu0 0
        %678 = vmatpush.bf16.msra.mxu0 0
        %679 = vmatpush.bf16.msra.mxu0 0
        %680 = vmatpush.bf16.msra.mxu0 %v668
        %681 = vmatmul.bf16.gmra.mxu0 %v671
        %v682 = vpop.f32.mrf.mxu0
        %v683 = vadd.f32 0.0, %v682
        %v684 = vpop.f32.mrf.mxu0
        %v685 = vadd.f32 0.0, %v684
        %686 = vdwg.mxu0
        %v687 = vrcp.pop %v656
        %v688 = vrcp.pop %v659
        %v689 = vmul.f32 %v683, %v687
        %v690 = vmul.f32 %v685, %v688
        %693 = vrot.lane.b32.xlu0 %v689, 16
        %v694 = vpop.permute.xlu0 %693
        %695 = vrot.lane.b32.xlu0 %v690, 16
        %v696 = vpop.permute.xlu0 %695
        %vm699 = vcmask 195712
        %700 = vst.msk [vmem:[#allocation2] sm:$0xff] %vm699, %v694
        %701 = vst.msk [vmem:[#allocation2 + $0x8] sm:$0xff] %vm699, %v696
        %702 = vrot.lane.b32.xlu0 %v458, 104
        %v703 = vpop.permute.xlu0 %702
        %704 = vrot.lane.b32.xlu0 %v458, 72
        %v705 = vpop.permute.xlu0 %704
        %v707 = vsel %vm461, %v703, 0
        %v710 = vsel %vm461, %v705, 0
        %712 = vmatpush.bf16.xpose.msra.mxu0 0
        %713 = vmatpush.bf16.xpose.msra.mxu0 0
        %714 = vmatpush.bf16.xpose.msra.mxu0 0
        %715 = vmatpush.bf16.xpose.msra.mxu0 0
        %716 = vmatpush.bf16.xpose.msra.mxu0 0
        %717 = vmatpush.bf16.xpose.msra.mxu0 0
        %718 = vmatpush.bf16.xpose.msra.mxu0 0
        %719 = vmatpush.bf16.xpose.msra.mxu0 %v710
        %720 = vmatmul.bf16.gmra.mxu0 %v707
        %v721 = vpop.f32.mrf.mxu0
        %v722 = vadd.f32 0.0, %v721
        %v723 = vpop.f32.mrf.mxu0
        %v724 = vadd.f32 0.0, %v723
        %725 = vdwg.mxu0
        %v726 = vsel %vm482, %v722, -inf
        %727 = vmax.xlane.f32.xlu0 %v726
        %v728 = vpop.xlane.xlu0 %727
        %v729 = vsel %vm482, %v724, -inf
        %730 = vmax.xlane.f32.xlu0 %v729
        %v731 = vpop.xlane.xlu0 %730
        %v732 = vsub.f32 %v722, %v728
        %v733 = vsub.f32 %v724, %v731
        %v734 = vmul.f32 %v732, 1.442695
        %v735 = vpow.pop %v734
        %v736 = vmul.f32 %v733, 1.442695
        %v737 = vpow.pop %v736
        %v738 = vsel %vm482, %v735, 0.0
        %739 = vadd.xlane.f32.xlu0 %v738
        %v740 = vpop.xlane.xlu0 %739
        %v741 = vsel %vm482, %v737, 0.0
        %742 = vadd.xlane.f32.xlu0 %v741
        %v743 = vpop.xlane.xlu0 %742
        %v744 = vpack.c.bf16 %v735, %v735
        %v745 = vpack.c.bf16 %v737, %v737
        %v748 = vunpack.c.l.b16 %v744
        %v749 = vunpack.c.l.b16 %v745
        %v750 = vpack.c.b16 %v749, %v748
        %751 = vrot.lane.b32.xlu0 %v458, 40
        %v752 = vpop.permute.xlu0 %751
        %v755 = vsel %vm482, %v750, 0
        %757 = vmatpush.bf16.msra.mxu0 0
        %758 = vmatpush.bf16.msra.mxu0 0
        %759 = vmatpush.bf16.msra.mxu0 0
        %760 = vmatpush.bf16.msra.mxu0 0
        %761 = vmatpush.bf16.msra.mxu0 0
        %762 = vmatpush.bf16.msra.mxu0 0
        %763 = vmatpush.bf16.msra.mxu0 0
        %764 = vmatpush.bf16.msra.mxu0 %v752
        %765 = vmatmul.bf16.gmra.mxu0 %v755
        %v766 = vpop.f32.mrf.mxu0
        %v767 = vadd.f32 0.0, %v766
        %v768 = vpop.f32.mrf.mxu0
        %v769 = vadd.f32 0.0, %v768
        %770 = vdwg.mxu0
        %v771 = vrcp.pop %v740
        %v772 = vrcp.pop %v743
        %v773 = vmul.f32 %v767, %v771
        %v774 = vmul.f32 %v769, %v772
        %777 = vrot.lane.b32.xlu0 %v773, 24
        %v778 = vpop.permute.xlu0 %777
        %779 = vrot.lane.b32.xlu0 %v774, 24
        %v780 = vpop.permute.xlu0 %779
        %vm783 = vcmask 261312
        %784 = vst.msk [vmem:[#allocation2] sm:$0xff] %vm783, %v778
        %785 = vst.msk [vmem:[#allocation2 + $0x8] sm:$0xff] %vm783, %v780
        %v786 = vld [vmem:[#allocation2] sm:$0xff]
        %v787 = vld [vmem:[#allocation2 + $0x8] sm:$0xff]
        %v788 = vpack.c.bf16 %v787, %v786
        %v789 = vld [vmem:[#allocation9] sm:$0xf]
        %v790 = vld [vmem:[#allocation9 + $0x4] sm:$0xf]
        %v791 = vld [vmem:[#allocation9 + $0x8] sm:$0xf]
        %v792 = vld [vmem:[#allocation9 + $0xc] sm:$0xf]
        %v793 = vld [vmem:[%s6] sm:$0x1]
        %v795 = vperm.slane %v793, 0
        %v801 = vunpack.c.l.b16 %v789
        %v802 = vunpack.c.l.b16 %v790
        %v803 = vunpack.c.l.b16 %v791
        %v804 = vunpack.c.l.b16 %v792
        %v805 = vpack.c.b16 %v802, %v801
        %v806 = vpack.c.b16 %v804, %v803
        %v810 = vsel %vm350, %v788, 0
        %812 = vmatpush.bf16.msra.mxu0 0
        %813 = vmatpush.bf16.msra.mxu0 0
        %814 = vmatpush.bf16.msra.mxu0 0
        %815 = vmatpush.bf16.msra.mxu0 0
        %816 = vmatpush.bf16.msra.mxu0 0
        %817 = vmatpush.bf16.msra.mxu0 0
        %818 = vmatpush.bf16.msra.mxu0 %v806
        %819 = vmatpush.bf16.msra.mxu0 %v805
        %820 = vmatmul.bf16.gmra.mxu0 %v810
        %v821 = vpop.f32.mrf.mxu0
        %v822 = vadd.f32 %v795, %v821
        %v823 = vpop.f32.mrf.mxu0
        %v824 = vadd.f32 %v795, %v823
        %825 = vdwg.mxu0
        %v826 = vadd.f32 %v348, %v822
        %v827 = vadd.f32 %v349, %v824
        %828 = vst.msk [vmem:[%s346] sm:$0xff] %vm350, %v826
        %829 = vst.msk [vmem:[%s346 + $0x8] sm:$0xff] %vm350, %v827
        %s830 = sand.u32 %s186, 1
        %s831 = scalar_lea.sflag [#allocation5], %s830
        %s832 = sand.u32 %s186, 1
        %s833 = smul.addr %s832, 16
        %s834 = scalar_lea.vmem [#allocation11], %s833
        // Predicated region
        $region65: #{tpu_custom_call.1} parent=47 // pred_check
          %p835 = pneg %p196
        $region66: #{tpu_custom_call.1} parent=47 // pred_check_branch
          %837 = sbr.rel (%p835) target = $region68
        $region67: #{tpu_custom_call.1} parent=47 // pred_region
          %839 = vsyncadd %s831, 0
          %s840 = smul.addr %s26, 2
          %s841 = smul.addr %s840, 8
          %s842 = scalar_lea.hbm %s7, %s841
          %s843 = sshll.u32 %s834, 4
          %s844 = int_to_ptr.vmem [resolvable:$true] %s843
          %s845 = sshll.u32 %s842, 4
          %s846 = int_to_ptr.hbm [resolvable:$true] %s845
          %851 = dma.vmem_to_hbm [thread:$0]  %s844, 256, %s846, %s831, 128, 128, 8
        $region68: #{tpu_custom_call.1} parent=47 // pred_fallthru
          _
      $region48: #{tpu_custom_call.1} parent=5 // pred_fallthru
        _
      %p852 = scmp.le.s32.totalorder 2, %s21
      // Predicated region
      $region69: #{tpu_custom_call.1} parent=5 // pred_check
        %p853 = pneg %p852
      $region70: #{tpu_custom_call.1} parent=5 // pred_check_branch
        %855 = sbr.rel (%p853) target = $region72
      $region71: #{tpu_custom_call.1} parent=5 // pred_region
        %s856 = ssub.s32 %s21, 2
        // Predicated region
        $region73: #{tpu_custom_call.1} parent=71 // pred_check
          %p857 = pneg %p202
        $region74: #{tpu_custom_call.1} parent=71 // pred_check_branch
          %859 = sbr.rel (%p857) target = $region76
        $region75: #{tpu_custom_call.1} parent=71 // pred_region
          %s860 = sand.u32 %s187, 1
          %s861 = scalar_lea.sflag [#allocation5], %s860
          %s862 = sand.u32 %s187, 1
          %s863 = smul.addr %s862, 16
          %s864 = scalar_lea.vmem [#allocation11], %s863
          %866 = dma.done %s861, 256
        $region76: #{tpu_custom_call.1} parent=71 // pred_fallthru
          _
      $region72: #{tpu_custom_call.1} parent=5 // pred_fallthru
        _
    $region6: #{tpu_custom_call.1} parent=1 // loop_footer
      %s25 = sadd.s32 1, %s21
    $region7: #{tpu_custom_call.1} parent=1 // loop_footer_branch
      %20 = sbr.rel target = $region3
    $region8: #{tpu_custom_call.1} parent=1 // loop_exit
      _
    %867 = vsyncpa [#allocation4], 1
    %s868 = scalar_lea.sflag [#allocation4], 1
    %869 = vsyncpa %s868, 1
    %870 = vsyncpa [#allocation7], 1
    %871 = vsyncpa [#allocation10], 1
    %872 = vsyncpa [#allocation5], 1
    %s873 = scalar_lea.sflag [#allocation5], 1
    %874 = vsyncpa %s873, 1

// kernel: tpu_custom_call.1
$region0: #{tpu_custom_call.1}
  #allocation0 [shape = 'u32[]', space=smem, size = 0x4, offset = 0x4, fixed_abs, tag = 'smem constant byte address 0x4 - core index']
  #allocation1 [shape = 'u32[72,128]{1,0:T(1,128)}', space=vmem, size = 0x9000, scoped, tag = 'internal scratch']
  #allocation2 [shape = 'f32[16,32]{1,0:T(8,128)}', space=vmem, size = 0x2000, scoped, tag = 'scratch operand']
  %s0 = inlined_call_operand.hbm [shape: f32[2,16,32], index: 0, kind: input, shape index: {}]
  %s1 = inlined_call_operand.hbm [shape: f32[1,32], index: 1, kind: input, shape index: {}]
  %s2 = inlined_call_operand.vmem [shape: f32[1,32], index: 2, kind: input, shape index: {}]
  %s3 = inlined_call_operand.hbm [shape: bf16[32,96], index: 3, kind: input, shape index: {}]
  %s4 = inlined_call_operand.vmem [shape: f32[1,96], index: 4, kind: input, shape index: {}]
  %s5 = inlined_call_operand.hbm [shape: bf16[32,32], index: 5, kind: input, shape index: {}]
  %s6 = inlined_call_operand.vmem [shape: f32[1,32], index: 6, kind: input, shape index: {}]
  %s7 = inlined_call_operand.hbm [shape: f32[2,16,32], index: 7, kind: output, shape index: {}]
  %s8 = sld [smem:[#allocation0]]
  $region77: #{tpu_custom_call.1} parent=0
    _
  %s10 = ssub.s32 1, %s8
  %s11 = scalar_select 0, %s10, %s8
  $region1: #{tpu_custom_call.1} parent=0
    #allocation3 [shape = 'u8[16384]{0}', space=vmem, size = 0x4000, scoped, tag = 'input window, operand 0']
    #allocation4 [shape = 's32[2]{0}', space=sflag, size = 0x8, scoped, tag = 'scoped memory for tpu_custom_call.1']
    #allocation5 [shape = 's32[2]{0}', space=sflag, size = 0x8, scoped, tag = 'scoped memory for tpu_custom_call.1']
    #allocation6 [shape = 'u8[512]{0}', space=vmem, size = 0x400, scoped, tag = 'input window, operand 1, single buffered']
    #allocation7 [shape = 's32[1]{0}', space=sflag, size = 0x4, scoped, tag = 'scoped memory for tpu_custom_call.1']
    #allocation8 [shape = 'u8[8192]{0}', space=vmem, size = 0x2000, scoped, tag = 'input window, operand 3, single buffered']
    #allocation9 [shape = 'u8[8192]{0}', space=vmem, size = 0x2000, scoped, tag = 'input window, operand 5, single buffered']
    #allocation10 [shape = 's32[1]{0}', space=sflag, size = 0x4, scoped, tag = 'scoped memory for tpu_custom_call.1']
    #allocation11 [shape = 'u8[16384]{0}', space=vmem, size = 0x4000, scoped, tag = 'output window, operand 0']
    %12 = vsyncpa [#allocation4], 0
    %s13 = scalar_lea.sflag [#allocation4], 1
    %14 = vsyncpa %s13, 0
    %15 = vsyncpa [#allocation7], 0
    %16 = vsyncpa [#allocation10], 0
    %17 = vsyncpa [#allocation5], 0
    %s18 = scalar_lea.sflag [#allocation5], 1
    %19 = vsyncpa %s18, 0
    loop: start=0, step=1, limit=4
    $region2: #{tpu_custom_call.1} parent=1 // loop_pre_header
      _
    $region3: #{tpu_custom_call.1} parent=1 // loop_header
      %s21 = sphi 0, %s25
      %p22 = scmp.ge.s32.totalorder %s21, 4
      %s31 = sphi 0, %s33
      %s34 = sphi 0, %s31
      %s35 = sphi 0, %s34
      %s51 = sphi 0, %s35
      %s55 = sphi 0, %s55
      %s57 = sphi 0, %s55
      %s58 = sphi 0, %s57
      %s72 = sphi 0, %s58
      %s76 = sphi 0, %s76
      %s78 = sphi 0, %s76
      %s79 = sphi 0, %s78
      %s93 = sphi 0, %s79
      %s97 = sphi 0, %s97
      %s99 = sphi 0, %s97
      %s100 = sphi 0, %s99
      %s114 = sphi 0, %s100
      %s118 = sphi 0, %s118
      %s120 = sphi 0, %s118
      %s121 = sphi 0, %s120
      %s135 = sphi 0, %s121
      %s139 = sphi 0, %s139
      %s141 = sphi 0, %s139
      %s142 = sphi 0, %s141
      %s156 = sphi 0, %s142
      %s160 = sphi 0, %s160
      %s162 = sphi 0, %s160
      %s163 = sphi 0, %s162
      %s177 = sphi 0, %s163
      %s183 = sphi 0, %s185
      %s186 = sphi 0, %s183
      %s187 = sphi 0, %s186
      %s203 = sphi 0, %s187
    $region4: #{tpu_custom_call.1} parent=1 // loop_header_branch
      %24 = sbr.rel (%p22) target = $region8
    $region5: #{tpu_custom_call.1} parent=1 // loop_body
      %s26 = ssub.s32 %s21, 1
      %s27 = ssub.s32 %s21, 2
      %s28 = sadd.s32 %s21, 1
      %s29 = ssub.s32 %s21, %s28
      %p30 = scmp.eq.s32.totalorder %s29, 0
      %s32 = sadd.s32 %s31, 1
      %s33 = scalar_select %p30, %s31, %s32
      %p36 = pneg %p30
      %p37 = scmp.eq.s32.totalorder %s21, 1
      %p38 = por %p36, %p37
      %p39 = scmp.ne.s32.totalorder %s31, %s34
      %p40 = scmp.eq.s32.totalorder %s21, 0
      %p41 = por %p39, %p40
      %p42 = scmp.ne.s32.totalorder %s31, %s34
      %p43 = scmp.eq.s32.totalorder %s26, 1
      %p44 = por %p42, %p43
      %p45 = scmp.ne.s32.totalorder %s34, %s35
      %p46 = scmp.eq.s32.totalorder %s26, 0
      %p47 = por %p45, %p46
      %p48 = scmp.ne.s32.totalorder %s34, %s35
      %p49 = scmp.eq.s32.totalorder %s27, 1
      %p50 = por %p48, %p49
      %p52 = scmp.ne.s32.totalorder %s35, %s51
      %p53 = scmp.eq.s32.totalorder %s27, 0
      %p54 = por %p52, %p53
      %s56 = sadd.s32 %s55, 1
      %p59 = scmp.eq.s32.totalorder %s21, 1
      %p60 = scmp.ne.s32.totalorder %s55, %s57
      %p61 = scmp.eq.s32.totalorder %s21, 0
      %p62 = por %p60, %p61
      %p63 = scmp.ne.s32.totalorder %s55, %s57
      %p64 = scmp.eq.s32.totalorder %s26, 1
      %p65 = por %p63, %p64
      %p66 = scmp.ne.s32.totalorder %s57, %s58
      %p67 = scmp.eq.s32.totalorder %s26, 0
      %p68 = por %p66, %p67
      %p69 = scmp.ne.s32.totalorder %s57, %s58
      %p70 = scmp.eq.s32.totalorder %s27, 1
      %p71 = por %p69, %p70
      %p73 = scmp.ne.s32.totalorder %s58, %s72
      %p74 = scmp.eq.s32.totalorder %s27, 0
      %p75 = por %p73, %p74
      %s77 = sadd.s32 %s76, 1
      %p80 = scmp.eq.s32.totalorder %s21, 1
      %p81 = scmp.ne.s32.totalorder %s76, %s78
      %p82 = scmp.eq.s32.totalorder %s21, 0
      %p83 = por %p81, %p82
      %p84 = scmp.ne.s32.totalorder %s76, %s78
      %p85 = scmp.eq.s32.totalorder %s26, 1
      %p86 = por %p84, %p85
      %p87 = scmp.ne.s32.totalorder %s78, %s79
      %p88 = scmp.eq.s32.totalorder %s26, 0
      %p89 = por %p87, %p88
      %p90 = scmp.ne.s32.totalorder %s78, %s79
      %p91 = scmp.eq.s32.totalorder %s27, 1
      %p92 = por %p90, %p91
      %p94 = scmp.ne.s32.totalorder %s79, %s93
      %p95 = scmp.eq.s32.totalorder %s27, 0
      %p96 = por %p94, %p95
      %s98 = sadd.s32 %s97, 1
      %p101 = scmp.eq.s32.totalorder %s21, 1
      %p102 = scmp.ne.s32.totalorder %s97, %s99
      %p103 = scmp.eq.s32.totalorder %s21, 0
      %p104 = por %p102, %p103
      %p105 = scmp.ne.s32.totalorder %s97, %s99
      %p106 = scmp.eq.s32.totalorder %s26, 1
      %p107 = por %p105, %p106
      %p108 = scmp.ne.s32.totalorder %s99, %s100
      %p109 = scmp.eq.s32.totalorder %s26, 0
      %p110 = por %p108, %p109
      %p111 = scmp.ne.s32.totalorder %s99, %s100
      %p112 = scmp.eq.s32.totalorder %s27, 1
      %p113 = por %p111, %p112
      %p115 = scmp.ne.s32.totalorder %s100, %s114
      %p116 = scmp.eq.s32.totalorder %s27, 0
      %p117 = por %p115, %p116
      %s119 = sadd.s32 %s118, 1
      %p122 = scmp.eq.s32.totalorder %s21, 1
      %p123 = scmp.ne.s32.totalorder %s118, %s120
      %p124 = scmp.eq.s32.totalorder %s21, 0
      %p125 = por %p123, %p124
      %p126 = scmp.ne.s32.totalorder %s118, %s120
      %p127 = scmp.eq.s32.totalorder %s26, 1
      %p128 = por %p126, %p127
      %p129 = scmp.ne.s32.totalorder %s120, %s121
      %p130 = scmp.eq.s32.totalorder %s26, 0
      %p131 = por %p129, %p130
      %p132 = scmp.ne.s32.totalorder %s120, %s121
      %p133 = scmp.eq.s32.totalorder %s27, 1
      %p134 = por %p132, %p133
      %p136 = scmp.ne.s32.totalorder %s121, %s135
      %p137 = scmp.eq.s32.totalorder %s27, 0
      %p138 = por %p136, %p137
      %s140 = sadd.s32 %s139, 1
      %p143 = scmp.eq.s32.totalorder %s21, 1
      %p144 = scmp.ne.s32.totalorder %s139, %s141
      %p145 = scmp.eq.s32.totalorder %s21, 0
      %p146 = por %p144, %p145
      %p147 = scmp.ne.s32.totalorder %s139, %s141
      %p148 = scmp.eq.s32.totalorder %s26, 1
      %p149 = por %p147, %p148
      %p150 = scmp.ne.s32.totalorder %s141, %s142
      %p151 = scmp.eq.s32.totalorder %s26, 0
      %p152 = por %p150, %p151
      %p153 = scmp.ne.s32.totalorder %s141, %s142
      %p154 = scmp.eq.s32.totalorder %s27, 1
      %p155 = por %p153, %p154
      %p157 = scmp.ne.s32.totalorder %s142, %s156
      %p158 = scmp.eq.s32.totalorder %s27, 0
      %p159 = por %p157, %p158
      %s161 = sadd.s32 %s160, 1
      %p164 = scmp.eq.s32.totalorder %s21, 1
      %p165 = scmp.ne.s32.totalorder %s160, %s162
      %p166 = scmp.eq.s32.totalorder %s21, 0
      %p167 = por %p165, %p166
      %p168 = scmp.ne.s32.totalorder %s160, %s162
      %p169 = scmp.eq.s32.totalorder %s26, 1
      %p170 = por %p168, %p169
      %p171 = scmp.ne.s32.totalorder %s162, %s163
      %p172 = scmp.eq.s32.totalorder %s26, 0
      %p173 = por %p171, %p172
      %p174 = scmp.ne.s32.totalorder %s162, %s163
      %p175 = scmp.eq.s32.totalorder %s27, 1
      %p176 = por %p174, %p175
      %p178 = scmp.ne.s32.totalorder %s163, %s177
      %p179 = scmp.eq.s32.totalorder %s27, 0
      %p180 = por %p178, %p179
      %s181 = ssub.s32 %s21, %s28
      %p182 = scmp.eq.s32.totalorder %s181, 0
      %s184 = sadd.s32 %s183, 1
      %s185 = scalar_select %p182, %s183, %s184
      %p188 = pneg %p182
      %p189 = scmp.eq.s32.totalorder %s21, 1
      %p190 = por %p188, %p189
      %p191 = scmp.ne.s32.totalorder %s183, %s186
      %p192 = scmp.eq.s32.totalorder %s21, 0
      %p193 = por %p191, %p192
      %p194 = scmp.ne.s32.totalorder %s183, %s186
      %p195 = scmp.eq.s32.totalorder %s26, 1
      %p196 = por %p194, %p195
      %p197 = scmp.ne.s32.totalorder %s186, %s187
      %p198 = scmp.eq.s32.totalorder %s26, 0
      %p199 = por %p197, %p198
      %p200 = scmp.ne.s32.totalorder %s186, %s187
      %p201 = scmp.eq.s32.totalorder %s27, 1
      %p202 = por %p200, %p201
      %p204 = scmp.ne.s32.totalorder %s187, %s203
      %p205 = scmp.eq.s32.totalorder %s27, 0
      %p206 = por %p204, %p205
      %p207 = scmp.le.s32.totalorder 1, %s21
      %p208 = scmp.lt.s32.totalorder %s21, 3
      %p209 = pnand %p207, %p208
      %p210 = pneg %p209
      // Predicated region
      $region9: #{tpu_custom_call.1} parent=5 // pred_check
        _
      $region10: #{tpu_custom_call.1} parent=5 // pred_check_branch
        %212 = sbr.rel (%p209) target = $region12
      $region11: #{tpu_custom_call.1} parent=5 // pred_region
        %s213 = ssub.s32 %s21, 1
        // Predicated region
        $region13: #{tpu_custom_call.1} parent=11 // pred_check
          %p214 = pneg %p68
        $region14: #{tpu_custom_call.1} parent=11 // pred_check_branch
          %216 = sbr.rel (%p214) target = $region16
        $region15: #{tpu_custom_call.1} parent=11 // pred_region
          %218 = vsyncadd [#allocation7], 0
          %s220 = sshll.u32 %s1, 4
          %s221 = int_to_ptr.hbm [resolvable:$true] %s220
          %s222 = sshll.u32 [#allocation6], 4
          %s223 = int_to_ptr.vmem [resolvable:$true] %s222
          %225 = dma.hbm_to_vmem [thread:$0]  %s221, 16, %s223, [#allocation7]
        $region16: #{tpu_custom_call.1} parent=11 // pred_fallthru
          _
        // Predicated region
        $region17: #{tpu_custom_call.1} parent=11 // pred_check
          %p226 = pneg %p89
        $region18: #{tpu_custom_call.1} parent=11 // pred_check_branch
          %228 = sbr.rel (%p226) target = $region20
        $region19: #{tpu_custom_call.1} parent=11 // pred_region
          _
        $region20: #{tpu_custom_call.1} parent=11 // pred_fallthru
          _
        // Predicated region
        $region21: #{tpu_custom_call.1} parent=11 // pred_check
          %p229 = pneg %p110
        $region22: #{tpu_custom_call.1} parent=11 // pred_check_branch
          %231 = sbr.rel (%p229) target = $region24
        $region23: #{tpu_custom_call.1} parent=11 // pred_region
          %233 = vsyncadd [#allocation7], 0
          %s234 = sshll.u32 %s3, 4
          %s235 = int_to_ptr.hbm [resolvable:$true] %s234
          %s236 = sshll.u32 [#allocation8], 4
          %s237 = int_to_ptr.vmem [resolvable:$true] %s236
          %242 = dma.hbm_to_vmem [thread:$0]  %s235, 256, %s237, [#allocation7], 64, 64, 4
        $region24: #{tpu_custom_call.1} parent=11 // pred_fallthru
          _
        // Predicated region
        $region25: #{tpu_custom_call.1} parent=11 // pred_check
          %p243 = pneg %p131
        $region26: #{tpu_custom_call.1} parent=11 // pred_check_branch
          %245 = sbr.rel (%p243) target = $region28
        $region27: #{tpu_custom_call.1} parent=11 // pred_region
          _
        $region28: #{tpu_custom_call.1} parent=11 // pred_fallthru
          _
        // Predicated region
        $region29: #{tpu_custom_call.1} parent=11 // pred_check
          %p246 = pneg %p152
        $region30: #{tpu_custom_call.1} parent=11 // pred_check_branch
          %248 = sbr.rel (%p246) target = $region32
        $region31: #{tpu_custom_call.1} parent=11 // pred_region
          %250 = vsyncadd [#allocation10], 0
          %s251 = sshll.u32 %s5, 4
          %s252 = int_to_ptr.hbm [resolvable:$true] %s251
          %s253 = sshll.u32 [#allocation9], 4
          %s254 = int_to_ptr.vmem [resolvable:$true] %s253
          %259 = dma.hbm_to_vmem [thread:$0]  %s252, 256, %s254, [#allocation10], 64, 64, 4
        $region32: #{tpu_custom_call.1} parent=11 // pred_fallthru
          _
        // Predicated region
        $region33: #{tpu_custom_call.1} parent=11 // pred_check
          %p260 = pneg %p173
        $region34: #{tpu_custom_call.1} parent=11 // pred_check_branch
          %262 = sbr.rel (%p260) target = $region36
        $region35: #{tpu_custom_call.1} parent=11 // pred_region
          _
        $region36: #{tpu_custom_call.1} parent=11 // pred_fallthru
          _
      $region12: #{tpu_custom_call.1} parent=5 // pred_fallthru
        _
      %p263 = scmp.lt.s32.totalorder %s21, 2
      // Predicated region
      $region37: #{tpu_custom_call.1} parent=5 // pred_check
        %p264 = pneg %p263
      $region38: #{tpu_custom_call.1} parent=5 // pred_check_branch
        %266 = sbr.rel (%p264) target = $region40
      $region39: #{tpu_custom_call.1} parent=5 // pred_region
        // Predicated region
        $region41: #{tpu_custom_call.1} parent=39 // pred_check
          %p267 = pneg %p41
        $region42: #{tpu_custom_call.1} parent=39 // pred_check_branch
          %269 = sbr.rel (%p267) target = $region44
        $region43: #{tpu_custom_call.1} parent=39 // pred_region
          %s270 = sand.u32 %s31, 1
          %s271 = scalar_lea.sflag [#allocation4], %s270
          %s272 = sand.u32 %s31, 1
          %s273 = smul.addr %s272, 16
          %s274 = scalar_lea.vmem [#allocation3], %s273
          %276 = vsyncadd %s271, 0
          %s277 = smul.addr %s21, 2
          %s278 = smul.addr %s277, 8
          %s279 = scalar_lea.hbm %s0, %s278
          %s280 = sshll.u32 %s279, 4
          %s281 = int_to_ptr.hbm [resolvable:$true] %s280
          %s282 = sshll.u32 %s274, 4
          %s283 = int_to_ptr.vmem [resolvable:$true] %s282
          %288 = dma.hbm_to_vmem [thread:$0]  %s281, 256, %s283, %s271, 128, 128, 8
        $region44: #{tpu_custom_call.1} parent=39 // pred_fallthru
          _
      $region40: #{tpu_custom_call.1} parent=5 // pred_fallthru
        _
      %p289 = scmp.le.s32.totalorder 1, %s21
      %p290 = scmp.lt.s32.totalorder %s21, 3
      %p291 = pnand %p289, %p290
      %p292 = pneg %p291
      // Predicated region
      $region45: #{tpu_custom_call.1} parent=5 // pred_check
        _
      $region46: #{tpu_custom_call.1} parent=5 // pred_check_branch
        %294 = sbr.rel (%p291) target = $region48
      $region47: #{tpu_custom_call.1} parent=5 // pred_region
        %s295 = ssub.s32 %s21, 1
        %s296 = sand.u32 %s34, 1
        %s297 = scalar_lea.sflag [#allocation4], %s296
        %s298 = sand.u32 %s34, 1
        %s299 = smul.addr %s298, 16
        %s300 = scalar_lea.vmem [#allocation3], %s299
        // Predicated region
        $region49: #{tpu_custom_call.1} parent=47 // pred_check
          %p301 = pneg %p47
        $region50: #{tpu_custom_call.1} parent=47 // pred_check_branch
          %303 = sbr.rel (%p301) target = $region52
        $region51: #{tpu_custom_call.1} parent=47 // pred_region
          %305 = dma.done %s297, 256
        $region52: #{tpu_custom_call.1} parent=47 // pred_fallthru
          _
        // Predicated region
        $region53: #{tpu_custom_call.1} parent=47 // pred_check
          %p306 = pneg %p68
        $region54: #{tpu_custom_call.1} parent=47 // pred_check_branch
          %308 = sbr.rel (%p306) target = $region56
        $region55: #{tpu_custom_call.1} parent=47 // pred_region
          %310 = dma.done [#allocation7], 16
        $region56: #{tpu_custom_call.1} parent=47 // pred_fallthru
          _
        // Predicated region
        $region57: #{tpu_custom_call.1} parent=47 // pred_check
          %p311 = pneg %p110
        $region58: #{tpu_custom_call.1} parent=47 // pred_check_branch
          %313 = sbr.rel (%p311) target = $region60
        $region59: #{tpu_custom_call.1} parent=47 // pred_region
          %315 = dma.done [#allocation7], 256
        $region60: #{tpu_custom_call.1} parent=47 // pred_fallthru
          _
        // Predicated region
        $region61: #{tpu_custom_call.1} parent=47 // pred_check
          %p316 = pneg %p152
        $region62: #{tpu_custom_call.1} parent=47 // pred_check_branch
          %318 = sbr.rel (%p316) target = $region64
        $region63: #{tpu_custom_call.1} parent=47 // pred_region
          %320 = dma.done [#allocation10], 256
        $region64: #{tpu_custom_call.1} parent=47 // pred_fallthru
          _
        %s321 = sand.u32 %s34, 1
        %s322 = scalar_lea.sflag [#allocation4], %s321
        %s323 = sand.u32 %s34, 1
        %s324 = smul.addr %s323, 16
        %s325 = scalar_lea.vmem [#allocation3], %s324
        %p326 = pneg %p47
        %p327 = pneg %p44
        %p328 = pneg %p68
        %p329 = pneg %p65
        %p330 = pneg %p89
        %p331 = pneg %p86
        %p332 = pneg %p110
        %p333 = pneg %p107
        %p334 = pneg %p131
        %p335 = pneg %p128
        %p336 = pneg %p152
        %p337 = pneg %p149
        %p338 = pneg %p173
        %p339 = pneg %p170
        %p340 = pneg %p199
        %p341 = pneg %p196
        %s342 = sand.u32 %s186, 1
        %s343 = scalar_lea.sflag [#allocation5], %s342
        %s344 = sand.u32 %s186, 1
        %s345 = smul.addr %s344, 16
        %s346 = scalar_lea.vmem [#allocation11], %s345
        %v348 = vld [vmem:[%s300] sm:$0xff]
        %v349 = vld [vmem:[%s300 + $0x8] sm:$0xff]
        %vm350 = vcmask 261120
        %v351 = vsel %vm350, %v348, 0.0
        %352 = vadd.xlane.f32.xlu0 %v351
        %v353 = vpop.xlane.xlu0 %352
        %v354 = vsel %vm350, %v349, 0.0
        %355 = vadd.xlane.f32.xlu0 %v354
        %v356 = vpop.xlane.xlu0 %355
        %v357 = vrcp.pop 32.0
        %v358 = vmul.f32 32.0, %v357
        %v359 = vsub.f32 1.0, %v358
        %v360 = vmul.f32 %v357, %v359
        %v361 = vadd.f32 %v357, %v360
        %vm362 = vweird.f32 %v357
        %v363 = vsel %vm362, %v357, %v361
        %v364 = vmul.f32 %v353, %v363
        %v365 = vmul.f32 %v356, %v363
        %v366 = vsub.f32 %v348, %v364
        %v367 = vsub.f32 %v349, %v365
        %v368 = vmul.f32 %v366, %v366
        %v369 = vmul.f32 %v367, %v367
        %v370 = vsel %vm350, %v368, 0.0
        %371 = vadd.xlane.f32.xlu0 %v370
        %v372 = vpop.xlane.xlu0 %371
        %v373 = vsel %vm350, %v369, 0.0
        %374 = vadd.xlane.f32.xlu0 %v373
        %v375 = vpop.xlane.xlu0 %374
        %v376 = vmul.f32 %v372, %v363
        %v377 = vmul.f32 %v375, %v363
        %v378 = vadd.f32 %v376, 1e-05
        %v379 = vadd.f32 %v377, 1e-05
        %v380 = vrsqrt.pop %v378
        %v381 = vmul.f32 %v380, %v378
        %v382 = vmul.f32 %v381, %v380
        %v383 = vmul.f32 0.5, %v382
        %v384 = vsub.f32 1.5, %v383
        %v385 = vmul.f32 %v380, %v384
        %vm386 = vweird.f32 %v378
        %vm387 = vweird.f32 %v380
        %vm388 = vmor %vm386, %vm387
        %v389 = vsel %vm388, %v380, %v385
        %v390 = vrsqrt.pop %v379
        %v391 = vmul.f32 %v390, %v379
        %v392 = vmul.f32 %v391, %v390
        %v393 = vmul.f32 0.5, %v392
        %v394 = vsub.f32 1.5, %v393
        %v395 = vmul.f32 %v390, %v394
        %vm396 = vweird.f32 %v379
        %vm397 = vweird.f32 %v390
        %vm398 = vmor %vm396, %vm397
        %v399 = vsel %vm398, %v390, %v395
        %v400 = vmul.f32 %v366, %v389
        %v401 = vmul.f32 %v367, %v399
        %v402 = vld [vmem:[#allocation6] sm:$0x1]
        %v404 = vperm.slane %v402, 0
        %v406 = vmul.f32 %v400, %v404
        %v407 = vmul.f32 %v401, %v404
        %v408 = vld [vmem:[%s2] sm:$0x1]
        %v410 = vperm.slane %v408, 0
        %v412 = vadd.f32 %v406, %v410
        %v413 = vadd.f32 %v407, %v410
        %v414 = vpack.c.bf16 %v413, %v412
        %v415 = vld [vmem:[#allocation8] sm:$0xf]
        %v416 = vld [vmem:[#allocation8 + $0x4] sm:$0xf]
        %v417 = vld [vmem:[#allocation8 + $0x8] sm:$0xf]
        %v418 = vld [vmem:[#allocation8 + $0xc] sm:$0xf]
        %v419 = vld [vmem:[%s4] sm:$0x1]
        %v421 = vperm.slane %v419, 0
        %v427 = vunpack.c.l.b16 %v415
        %v428 = vunpack.c.l.b16 %v416
        %v429 = vunpack.c.l.b16 %v417
        %v430 = vunpack.c.l.b16 %v418
        %v431 = vpack.c.b16 %v428, %v427
        %v432 = vpack.c.b16 %v430, %v429
        %v436 = vsel %vm350, %v414, 0
        %438 = vmatpush.bf16.msra.mxu0 0
        %439 = vmatpush.bf16.msra.mxu0 0
        %440 = vmatpush.bf16.msra.mxu0 0
        %441 = vmatpush.bf16.msra.mxu0 0
        %442 = vmatpush.bf16.msra.mxu0 0
        %443 = vmatpush.bf16.msra.mxu0 0
        %444 = vmatpush.bf16.msra.mxu0 %v432
        %445 = vmatpush.bf16.msra.mxu0 %v431
        %446 = vmatmul.bf16.gmra.mxu0 %v436
        %v447 = vpop.f32.mrf.mxu0
        %v448 = vadd.f32 %v421, %v447
        %v449 = vpop.f32.mrf.mxu0
        %v450 = vadd.f32 %v421, %v449
        %451 = vdwg.mxu0
        %v452 = vpack.c.bf16 %v448, %v448
        %v453 = vpack.c.bf16 %v450, %v450
        %v456 = vunpack.c.l.b16 %v452
        %v457 = vunpack.c.l.b16 %v453
        %v458 = vpack.c.b16 %v457, %v456
        %459 = vrot.lane.b32.xlu0 %v458, 96
        %v460 = vpop.permute.xlu0 %459
        %vm461 = vcmask 64512
        %v463 = vsel %vm461, %v458, 0
        %v466 = vsel %vm461, %v460, 0
        %468 = vmatpush.bf16.xpose.msra.mxu0 0
        %469 = vmatpush.bf16.xpose.msra.mxu0 0
        %470 = vmatpush.bf16.xpose.msra.mxu0 0
        %471 = vmatpush.bf16.xpose.msra.mxu0 0
        %472 = vmatpush.bf16.xpose.msra.mxu0 0
        %473 = vmatpush.bf16.xpose.msra.mxu0 0
        %474 = vmatpush.bf16.xpose.msra.mxu0 0
        %475 = vmatpush.bf16.xpose.msra.mxu0 %v466
        %476 = vmatmul.bf16.gmra.mxu0 %v463
        %v477 = vpop.f32.mrf.mxu0
        %v478 = vadd.f32 0.0, %v477
        %v479 = vpop.f32.mrf.mxu0
        %v480 = vadd.f32 0.0, %v479
        %481 = vdwg.mxu0
        %vm482 = vcmask 130048
        %v483 = vsel %vm482, %v478, -inf
        %484 = vmax.xlane.f32.xlu0 %v483
        %v485 = vpop.xlane.xlu0 %484
        %v486 = vsel %vm482, %v480, -inf
        %487 = vmax.xlane.f32.xlu0 %v486
        %v488 = vpop.xlane.xlu0 %487
        %v489 = vsub.f32 %v478, %v485
        %v490 = vsub.f32 %v480, %v488
        %v491 = vmul.f32 %v489, 1.442695
        %v492 = vpow.pop %v491
        %v493 = vmul.f32 %v490, 1.442695
        %v494 = vpow.pop %v493
        %v495 = vsel %vm482, %v492, 0.0
        %496 = vadd.xlane.f32.xlu0 %v495
        %v497 = vpop.xlane.xlu0 %496
        %v498 = vsel %vm482, %v494, 0.0
        %499 = vadd.xlane.f32.xlu0 %v498
        %v500 = vpop.xlane.xlu0 %499
        %v501 = vpack.c.bf16 %v492, %v492
        %v502 = vpack.c.bf16 %v494, %v494
        %v505 = vunpack.c.l.b16 %v501
        %v506 = vunpack.c.l.b16 %v502
        %v507 = vpack.c.b16 %v506, %v505
        %508 = vrot.lane.b32.xlu0 %v458, 64
        %v509 = vpop.permute.xlu0 %508
        %v512 = vsel %vm482, %v507, 0
        %514 = vmatpush.bf16.msra.mxu0 0
        %515 = vmatpush.bf16.msra.mxu0 0
        %516 = vmatpush.bf16.msra.mxu0 0
        %517 = vmatpush.bf16.msra.mxu0 0
        %518 = vmatpush.bf16.msra.mxu0 0
        %519 = vmatpush.bf16.msra.mxu0 0
        %520 = vmatpush.bf16.msra.mxu0 0
        %521 = vmatpush.bf16.msra.mxu0 %v509
        %522 = vmatmul.bf16.gmra.mxu0 %v512
        %v523 = vpop.f32.mrf.mxu0
        %v524 = vadd.f32 0.0, %v523
        %v525 = vpop.f32.mrf.mxu0
        %v526 = vadd.f32 0.0, %v525
        %527 = vdwg.mxu0
        %v528 = vrcp.pop %v497
        %v529 = vrcp.pop %v500
        %v530 = vmul.f32 %v524, %v528
        %v531 = vmul.f32 %v526, %v529
        %532 = vst.msk [vmem:[#allocation2] sm:$0xff] %vm461, %v530
        %533 = vst.msk [vmem:[#allocation2 + $0x8] sm:$0xff] %vm461, %v531
        %534 = vrot.lane.b32.xlu0 %v458, 120
        %v535 = vpop.permute.xlu0 %534
        %536 = vrot.lane.b32.xlu0 %v458, 88
        %v537 = vpop.permute.xlu0 %536
        %v539 = vsel %vm461, %v535, 0
        %v542 = vsel %vm461, %v537, 0
        %544 = vmatpush.bf16.xpose.msra.mxu0 0
        %545 = vmatpush.bf16.xpose.msra.mxu0 0
        %546 = vmatpush.bf16.xpose.msra.mxu0 0
        %547 = vmatpush.bf16.xpose.msra.mxu0 0
        %548 = vmatpush.bf16.xpose.msra.mxu0 0
        %549 = vmatpush.bf16.xpose.msra.mxu0 0
        %550 = vmatpush.bf16.xpose.msra.mxu0 0
        %551 = vmatpush.bf16.xpose.msra.mxu0 %v542
        %552 = vmatmul.bf16.gmra.mxu0 %v539
        %v553 = vpop.f32.mrf.mxu0
        %v554 = vadd.f32 0.0, %v553
        %v555 = vpop.f32.mrf.mxu0
        %v556 = vadd.f32 0.0, %v555
        %557 = vdwg.mxu0
        %v558 = vsel %vm482, %v554, -inf
        %559 = vmax.xlane.f32.xlu0 %v558
        %v560 = vpop.xlane.xlu0 %559
        %v561 = vsel %vm482, %v556, -inf
        %562 = vmax.xlane.f32.xlu0 %v561
        %v563 = vpop.xlane.xlu0 %562
        %v564 = vsub.f32 %v554, %v560
        %v565 = vsub.f32 %v556, %v563
        %v566 = vmul.f32 %v564, 1.442695
        %v567 = vpow.pop %v566
        %v568 = vmul.f32 %v565, 1.442695
        %v569 = vpow.pop %v568
        %v570 = vsel %vm482, %v567, 0.0
        %571 = vadd.xlane.f32.xlu0 %v570
        %v572 = vpop.xlane.xlu0 %571
        %v573 = vsel %vm482, %v569, 0.0
        %574 = vadd.xlane.f32.xlu0 %v573
        %v575 = vpop.xlane.xlu0 %574
        %v576 = vpack.c.bf16 %v567, %v567
        %v577 = vpack.c.bf16 %v569, %v569
        %v580 = vunpack.c.l.b16 %v576
        %v581 = vunpack.c.l.b16 %v577
        %v582 = vpack.c.b16 %v581, %v580
        %583 = vrot.lane.b32.xlu0 %v458, 56
        %v584 = vpop.permute.xlu0 %583
        %v587 = vsel %vm482, %v582, 0
        %589 = vmatpush.bf16.msra.mxu0 0
        %590 = vmatpush.bf16.msra.mxu0 0
        %591 = vmatpush.bf16.msra.mxu0 0
        %592 = vmatpush.bf16.msra.mxu0 0
        %593 = vmatpush.bf16.msra.mxu0 0
        %594 = vmatpush.bf16.msra.mxu0 0
        %595 = vmatpush.bf16.msra.mxu0 0
        %596 = vmatpush.bf16.msra.mxu0 %v584
        %597 = vmatmul.bf16.gmra.mxu0 %v587
        %v598 = vpop.f32.mrf.mxu0
        %v599 = vadd.f32 0.0, %v598
        %v600 = vpop.f32.mrf.mxu0
        %v601 = vadd.f32 0.0, %v600
        %602 = vdwg.mxu0
        %v603 = vrcp.pop %v572
        %v604 = vrcp.pop %v575
        %v605 = vmul.f32 %v599, %v603
        %v606 = vmul.f32 %v601, %v604
        %609 = vrot.lane.b32.xlu0 %v605, 8
        %v610 = vpop.permute.xlu0 %609
        %611 = vrot.lane.b32.xlu0 %v606, 8
        %v612 = vpop.permute.xlu0 %611
        %vm615 = vcmask 130112
        %616 = vst.msk [vmem:[#allocation2] sm:$0xff] %vm615, %v610
        %617 = vst.msk [vmem:[#allocation2 + $0x8] sm:$0xff] %vm615, %v612
        %618 = vrot.lane.b32.xlu0 %v458, 112
        %v619 = vpop.permute.xlu0 %618
        %620 = vrot.lane.b32.xlu0 %v458, 80
        %v621 = vpop.permute.xlu0 %620
        %v623 = vsel %vm461, %v619, 0
        %v626 = vsel %vm461, %v621, 0
        %628 = vmatpush.bf16.xpose.msra.mxu0 0
        %629 = vmatpush.bf16.xpose.msra.mxu0 0
        %630 = vmatpush.bf16.xpose.msra.mxu0 0
        %631 = vmatpush.bf16.xpose.msra.mxu0 0
        %632 = vmatpush.bf16.xpose.msra.mxu0 0
        %633 = vmatpush.bf16.xpose.msra.mxu0 0
        %634 = vmatpush.bf16.xpose.msra.mxu0 0
        %635 = vmatpush.bf16.xpose.msra.mxu0 %v626
        %636 = vmatmul.bf16.gmra.mxu0 %v623
        %v637 = vpop.f32.mrf.mxu0
        %v638 = vadd.f32 0.0, %v637
        %v639 = vpop.f32.mrf.mxu0
        %v640 = vadd.f32 0.0, %v639
        %641 = vdwg.mxu0
        %v642 = vsel %vm482, %v638, -inf
        %643 = vmax.xlane.f32.xlu0 %v642
        %v644 = vpop.xlane.xlu0 %643
        %v645 = vsel %vm482, %v640, -inf
        %646 = vmax.xlane.f32.xlu0 %v645
        %v647 = vpop.xlane.xlu0 %646
        %v648 = vsub.f32 %v638, %v644
        %v649 = vsub.f32 %v640, %v647
        %v650 = vmul.f32 %v648, 1.442695
        %v651 = vpow.pop %v650
        %v652 = vmul.f32 %v649, 1.442695
        %v653 = vpow.pop %v652
        %v654 = vsel %vm482, %v651, 0.0
        %655 = vadd.xlane.f32.xlu0 %v654
        %v656 = vpop.xlane.xlu0 %655
        %v657 = vsel %vm482, %v653, 0.0
        %658 = vadd.xlane.f32.xlu0 %v657
        %v659 = vpop.xlane.xlu0 %658
        %v660 = vpack.c.bf16 %v651, %v651
        %v661 = vpack.c.bf16 %v653, %v653
        %v664 = vunpack.c.l.b16 %v660
        %v665 = vunpack.c.l.b16 %v661
        %v666 = vpack.c.b16 %v665, %v664
        %667 = vrot.lane.b32.xlu0 %v458, 48
        %v668 = vpop.permute.xlu0 %667
        %v671 = vsel %vm482, %v666, 0
        %673 = vmatpush.bf16.msra.mxu0 0
        %674 = vmatpush.bf16.msra.mxu0 0
        %675 = vmatpush.bf16.msra.mxu0 0
        %676 = vmatpush.bf16.msra.mxu0 0
        %677 = vmatpush.bf16.msra.mxu0 0
        %678 = vmatpush.bf16.msra.mxu0 0
        %679 = vmatpush.bf16.msra.mxu0 0
        %680 = vmatpush.bf16.msra.mxu0 %v668
        %681 = vmatmul.bf16.gmra.mxu0 %v671
        %v682 = vpop.f32.mrf.mxu0
        %v683 = vadd.f32 0.0, %v682
        %v684 = vpop.f32.mrf.mxu0
        %v685 = vadd.f32 0.0, %v684
        %686 = vdwg.mxu0
        %v687 = vrcp.pop %v656
        %v688 = vrcp.pop %v659
        %v689 = vmul.f32 %v683, %v687
        %v690 = vmul.f32 %v685, %v688
        %693 = vrot.lane.b32.xlu0 %v689, 16
        %v694 = vpop.permute.xlu0 %693
        %695 = vrot.lane.b32.xlu0 %v690, 16
        %v696 = vpop.permute.xlu0 %695
        %vm699 = vcmask 195712
        %700 = vst.msk [vmem:[#allocation2] sm:$0xff] %vm699, %v694
        %701 = vst.msk [vmem:[#allocation2 + $0x8] sm:$0xff] %vm699, %v696
        %702 = vrot.lane.b32.xlu0 %v458, 104
        %v703 = vpop.permute.xlu0 %702
        %704 = vrot.lane.b32.xlu0 %v458, 72
        %v705 = vpop.permute.xlu0 %704
        %v707 = vsel %vm461, %v703, 0
        %v710 = vsel %vm461, %v705, 0
        %712 = vmatpush.bf16.xpose.msra.mxu0 0
        %713 = vmatpush.bf16.xpose.msra.mxu0 0
        %714 = vmatpush.bf16.xpose.msra.mxu0 0
        %715 = vmatpush.bf16.xpose.msra.mxu0 0
        %716 = vmatpush.bf16.xpose.msra.mxu0 0
        %717 = vmatpush.bf16.xpose.msra.mxu0 0
        %718 = vmatpush.bf16.xpose.msra.mxu0 0
        %719 = vmatpush.bf16.xpose.msra.mxu0 %v710
        %720 = vmatmul.bf16.gmra.mxu0 %v707
        %v721 = vpop.f32.mrf.mxu0
        %v722 = vadd.f32 0.0, %v721
        %v723 = vpop.f32.mrf.mxu0
        %v724 = vadd.f32 0.0, %v723
        %725 = vdwg.mxu0
        %v726 = vsel %vm482, %v722, -inf
        %727 = vmax.xlane.f32.xlu0 %v726
        %v728 = vpop.xlane.xlu0 %727
        %v729 = vsel %vm482, %v724, -inf
        %730 = vmax.xlane.f32.xlu0 %v729
        %v731 = vpop.xlane.xlu0 %730
        %v732 = vsub.f32 %v722, %v728
        %v733 = vsub.f32 %v724, %v731
        %v734 = vmul.f32 %v732, 1.442695
        %v735 = vpow.pop %v734
        %v736 = vmul.f32 %v733, 1.442695
        %v737 = vpow.pop %v736
        %v738 = vsel %vm482, %v735, 0.0
        %739 = vadd.xlane.f32.xlu0 %v738
        %v740 = vpop.xlane.xlu0 %739
        %v741 = vsel %vm482, %v737, 0.0
        %742 = vadd.xlane.f32.xlu0 %v741
        %v743 = vpop.xlane.xlu0 %742
        %v744 = vpack.c.bf16 %v735, %v735
        %v745 = vpack.c.bf16 %v737, %v737
        %v748 = vunpack.c.l.b16 %v744
        %v749 = vunpack.c.l.b16 %v745
        %v750 = vpack.c.b16 %v749, %v748
        %751 = vrot.lane.b32.xlu0 %v458, 40
        %v752 = vpop.permute.xlu0 %751
        %v755 = vsel %vm482, %v750, 0
        %757 = vmatpush.bf16.msra.mxu0 0
        %758 = vmatpush.bf16.msra.mxu0 0
        %759 = vmatpush.bf16.msra.mxu0 0
        %760 = vmatpush.bf16.msra.mxu0 0
        %761 = vmatpush.bf16.msra.mxu0 0
        %762 = vmatpush.bf16.msra.mxu0 0
        %763 = vmatpush.bf16.msra.mxu0 0
        %764 = vmatpush.bf16.msra.mxu0 %v752
        %765 = vmatmul.bf16.gmra.mxu0 %v755
        %v766 = vpop.f32.mrf.mxu0
        %v767 = vadd.f32 0.0, %v766
        %v768 = vpop.f32.mrf.mxu0
        %v769 = vadd.f32 0.0, %v768
        %770 = vdwg.mxu0
        %v771 = vrcp.pop %v740
        %v772 = vrcp.pop %v743
        %v773 = vmul.f32 %v767, %v771
        %v774 = vmul.f32 %v769, %v772
        %777 = vrot.lane.b32.xlu0 %v773, 24
        %v778 = vpop.permute.xlu0 %777
        %779 = vrot.lane.b32.xlu0 %v774, 24
        %v780 = vpop.permute.xlu0 %779
        %vm783 = vcmask 261312
        %784 = vst.msk [vmem:[#allocation2] sm:$0xff] %vm783, %v778
        %785 = vst.msk [vmem:[#allocation2 + $0x8] sm:$0xff] %vm783, %v780
        %v786 = vld [vmem:[#allocation2] sm:$0xff]
        %v787 = vld [vmem:[#allocation2 + $0x8] sm:$0xff]
        %v788 = vpack.c.bf16 %v787, %v786
        %v789 = vld [vmem:[#allocation9] sm:$0xf]
        %v790 = vld [vmem:[#allocation9 + $0x4] sm:$0xf]
        %v791 = vld [vmem:[#allocation9 + $0x8] sm:$0xf]
        %v792 = vld [vmem:[#allocation9 + $0xc] sm:$0xf]
        %v793 = vld [vmem:[%s6] sm:$0x1]
        %v795 = vperm.slane %v793, 0
        %v801 = vunpack.c.l.b16 %v789
        %v802 = vunpack.c.l.b16 %v790
        %v803 = vunpack.c.l.b16 %v791
        %v804 = vunpack.c.l.b16 %v792
        %v805 = vpack.c.b16 %v802, %v801
        %v806 = vpack.c.b16 %v804, %v803
        %v810 = vsel %vm350, %v788, 0
        %812 = vmatpush.bf16.msra.mxu0 0
        %813 = vmatpush.bf16.msra.mxu0 0
        %814 = vmatpush.bf16.msra.mxu0 0
        %815 = vmatpush.bf16.msra.mxu0 0
        %816 = vmatpush.bf16.msra.mxu0 0
        %817 = vmatpush.bf16.msra.mxu0 0
        %818 = vmatpush.bf16.msra.mxu0 %v806
        %819 = vmatpush.bf16.msra.mxu0 %v805
        %820 = vmatmul.bf16.gmra.mxu0 %v810
        %v821 = vpop.f32.mrf.mxu0
        %v822 = vadd.f32 %v795, %v821
        %v823 = vpop.f32.mrf.mxu0
        %v824 = vadd.f32 %v795, %v823
        %825 = vdwg.mxu0
        %v826 = vadd.f32 %v348, %v822
        %v827 = vadd.f32 %v349, %v824
        %828 = vst.msk [vmem:[%s346] sm:$0xff] %vm350, %v826
        %829 = vst.msk [vmem:[%s346 + $0x8] sm:$0xff] %vm350, %v827
        %s830 = sand.u32 %s186, 1
        %s831 = scalar_lea.sflag [#allocation5], %s830
        %s832 = sand.u32 %s186, 1
        %s833 = smul.addr %s832, 16
        %s834 = scalar_lea.vmem [#allocation11], %s833
        // Predicated region
        $region65: #{tpu_custom_call.1} parent=47 // pred_check
          %p835 = pneg %p196
        $region66: #{tpu_custom_call.1} parent=47 // pred_check_branch
          %837 = sbr.rel (%p835) target = $region68
        $region67: #{tpu_custom_call.1} parent=47 // pred_region
          %839 = vsyncadd %s831, 0
          %s840 = smul.addr %s26, 2
          %s841 = smul.addr %s840, 8
          %s842 = scalar_lea.hbm %s7, %s841
          %s843 = sshll.u32 %s834, 4
          %s844 = int_to_ptr.vmem [resolvable:$true] %s843
          %s845 = sshll.u32 %s842, 4
          %s846 = int_to_ptr.hbm [resolvable:$true] %s845
          %851 = dma.vmem_to_hbm [thread:$0]  %s844, 256, %s846, %s831, 128, 128, 8
        $region68: #{tpu_custom_call.1} parent=47 // pred_fallthru
          _
      $region48: #{tpu_custom_call.1} parent=5 // pred_fallthru
        _
      %p852 = scmp.le.s32.totalorder 2, %s21
      // Predicated region
      $region69: #{tpu_custom_call.1} parent=5 // pred_check
        %p853 = pneg %p852
      $region70: #{tpu_custom_call.1} parent=5 // pred_check_branch
        %855 = sbr.rel (%p853) target = $region72
      $region71: #{tpu_custom_call.1} parent=5 // pred_region
        %s856 = ssub.s32 %s21, 2
        // Predicated region
        $region73: #{tpu_custom_call.1} parent=71 // pred_check
          %p857 = pneg %p202
        $region74: #{tpu_custom_call.1} parent=71 // pred_check_branch
          %859 = sbr.rel (%p857) target = $region76
        $region75: #{tpu_custom_call.1} parent=71 // pred_region
          %s860 = sand.u32 %s187, 1
          %s861 = scalar_lea.sflag [#allocation5], %s860
          %s862 = sand.u32 %s187, 1
          %s863 = smul.addr %s862, 16
          %s864 = scalar_lea.vmem [#allocation11], %s863
          %866 = dma.done %s861, 256
        $region76: #{tpu_custom_call.1} parent=71 // pred_fallthru
          _
      $region72: #{tpu_custom_call.1} parent=5 // pred_fallthru
        _
    $region6: #{tpu_custom_call.1} parent=1 // loop_footer
      %s25 = sadd.s32 1, %s21
    $region7: #{tpu_custom_call.1} parent=1 // loop_footer_branch
      %20 = sbr.rel target = $region3
    $region8: #{tpu_custom_call.1} parent=1 // loop_exit
      _
    %867 = vsyncpa [#allocation4], 1
    %s868 = scalar_lea.sflag [#allocation4], 1
    %869 = vsyncpa %s868, 1
    %870 = vsyncpa [#allocation7], 1
    %871 = vsyncpa [#allocation10], 1
    %872 = vsyncpa [#allocation5], 1
    %s873 = scalar_lea.sflag [#allocation5], 1
    %874 = vsyncpa %s873, 1

</llo_original>
